<compile_context>
chip_gen: v5e
topology: v5e:2x2
jax: 0.10.0
libtpu: 0.0.40
codegen_flags: <defaults>
</compile_context>

<pallas_src>
import math

import jax
import jax.numpy as jnp
from jax.experimental import pallas as pl
from jax.experimental.pallas import tpu as pltpu

# Model dimensions (synthetic, small but lane-friendly).
D = 128        # hidden size
V = 256        # vocab size
L = 64         # VAE latent size
L_PAD = 128    # latent padded to full lane width
FF = 4 * D


def _vae_router_kernel(
    # VMEM inputs
    ids_ref,          # (n_total, 1) int32: encoder rows then decoder rows (latent slot = -1)
    row_batch_ref,    # (n_dec, 1)  int32: decoder-row batch index
    col_info_ref,     # (2, n_dec)  int32: rows = [batch index per key, key-not-padded]
    pool_ref,         # (B, n_enc)  bf16 masked-mean-pool matrix (block diagonal)
    z_sel_ref,        # (n_dec, B)  bf16 latent-row selection matrix
    eps_ref,          # (B, L_PAD)  f32 unit-Gaussian noise (zero padded past L)
    w_embed_ref,      # (V, D)      bf16 (tied embedding + LM head)
    w_enc1_ref, w_enc2_ref,   # (D, D) bf16 encoder MLP
    w_mu_ref,         # (D, L_PAD)  bf16 (zero-padded columns)
    w_dec_ref,        # (L_PAD, D)  bf16 (zero-padded rows)
    w_qkv_ref,        # (D, 3D)     bf16 fused q/k/v
    wo_ref,           # (D, D)      bf16
    wup_ref,          # (D, FF)     bf16
    wdn_ref,          # (FF, D)     bf16
    # output
    logits_ref,       # (n_dec, V)  f32
):
    n_total = ids_ref.shape[0]
    _, n_enc = pool_ref.shape
    n_dec = z_sel_ref.shape[0]
    v, d = w_embed_ref.shape
    bf16 = jnp.bfloat16
    f32 = jnp.float32

    # ---- vectorized one-hot(ids): one VPU compare over the whole (N, V) block ----
    col_iota = jax.lax.broadcasted_iota(jnp.int32, (n_total, v), 1)
    one_hot = (ids_ref[...] == col_iota).astype(bf16)            # (n_total, V)

    # single embedding matmul for encoder + decoder token rows
    emb = jnp.dot(one_hot, w_embed_ref[...], preferred_element_type=f32)

    x = emb[:n_enc, :]       # (n_enc, D) encoder token embeddings
    xdec = emb[n_enc:, :]    # (n_dec, D) prefix / zero-latent-slot / target embeddings

    # ---------------- encoder model + vae.encode ----------------
    # TODO(synk): synthetic 1-block encoder stands in for the Mistral encoder adapter.
    h = jax.nn.gelu(jnp.dot(x.astype(bf16), w_enc1_ref[...],
                            preferred_element_type=f32), approximate=True)
    h = jnp.dot(h.astype(bf16), w_enc2_ref[...], preferred_element_type=f32) + x

    # masked mean pooling as a matmul (pool matrix holds mask / max(sum(mask),1))
    pooled = jnp.dot(pool_ref[...], h.astype(bf16),
                     preferred_element_type=f32)                 # (B, D)
    mean = jnp.dot(pooled.astype(bf16), w_mu_ref[...],
                   preferred_element_type=f32)                   # (B, L_PAD)

    # z = vae.sample(mean): mean + unit-Gaussian noise
    # TODO(synk): learned log-variance of vae.sample() is not reproducible here.
    z = mean + eps_ref[...]
    z_embed = jnp.dot(z.astype(bf16), w_dec_ref[...],
                      preferred_element_type=f32)                # (B, D)

    # insert z_embed row per batch: prefix ++ z ++ target
    xdec = xdec + jnp.dot(z_sel_ref[...], z_embed.astype(bf16),
                          preferred_element_type=f32)

    # ---------------- decoder block (batch folded, block-diag causal mask) ----------------
    qkv = jnp.dot(xdec.astype(bf16), w_qkv_ref[...],
                  preferred_element_type=f32)                    # (n_dec, 3D)
    q = qkv[:, :d]
    k = qkv[:, d:2 * d]
    vvals = qkv[:, 2 * d:]

    # scores = q @ k.T via transposed contraction on the MXU
    scores = jax.lax.dot_general(
        q.astype(bf16), k.astype(bf16),
        dimension_numbers=(((1,), (1,)), ((), ())),
        preferred_element_type=f32)                              # (n_dec, n_dec)
    scores = scores * (1.0 / math.sqrt(d))

    # additive mask built in-kernel: same batch AND causal AND key not padded
    ri = jax.lax.broadcasted_iota(jnp.int32, (n_dec, n_dec), 0)
    ci = jax.lax.broadcasted_iota(jnp.int32, (n_dec, n_dec), 1)
    rb = row_batch_ref[...]                                      # (n_dec, 1)
    cb = col_info_ref[0:1, :]                                    # (1, n_dec)
    cok = col_info_ref[1:2, :]                                   # (1, n_dec)
    allowed = (rb == cb) & (ci <= ri) & (cok > 0)
    scores = jnp.where(allowed, scores, -1e30)

    # exact softmax, reciprocal on the otherwise-idle EUP slot
    scores = scores - jnp.max(scores, axis=-1, keepdims=True)
    p = jnp.exp(scores)
    p = p * pl.reciprocal(jnp.sum(p, axis=-1, keepdims=True), approx=True)

    attn = jnp.dot(p.astype(bf16), vvals.astype(bf16), preferred_element_type=f32)
    hd = xdec + jnp.dot(attn.astype(bf16), wo_ref[...], preferred_element_type=f32)
    up = jax.nn.gelu(jnp.dot(hd.astype(bf16), wup_ref[...],
                             preferred_element_type=f32), approximate=True)
    hd = hd + jnp.dot(up.astype(bf16), wdn_ref[...], preferred_element_type=f32)

    # tied LM head: hd @ w_embed.T as a transposed contraction (no extra HBM copy)
    logits_ref[...] = jax.lax.dot_general(
        hd.astype(bf16), w_embed_ref[...],
        dimension_numbers=(((1,), (1,)), ((), ())),
        preferred_element_type=f32)


def vae_router_forward(params, embed_ids, embed_mask, target_ids, target_mask,
                       decoder_prefix_ids, decoder_prefix_mask, sample_key):
    b, s_e = embed_ids.shape
    s_p = decoder_prefix_ids.shape[1]
    s_t = target_ids.shape[1]
    t_dec = s_p + 1 + s_t
    n_enc = b * s_e
    n_dec = b * t_dec
    n_total = n_enc + n_dec
    w_embed = params["w_embed"]
    v, d = w_embed.shape
    latent = params["w_mu"].shape[1]

    bf = lambda a: a.astype(jnp.bfloat16)

    # flat token ids: encoder rows then decoder rows (latent slot = -1 -> zero one-hot row)
    dec_ids = jnp.concatenate(
        [decoder_prefix_ids.astype(jnp.int32),
         jnp.full((b, 1), -1, jnp.int32),
         target_ids.astype(jnp.int32)], axis=1)                     # (B, T)
    ids = jnp.concatenate(
        [embed_ids.astype(jnp.int32).reshape(n_enc),
         dec_ids.reshape(n_dec)]).reshape(n_total, 1)

    # noise for vae.sample(mean); latent padded to the lane width
    eps = jnp.zeros((b, L_PAD), jnp.float32).at[:, :latent].set(
        jax.random.normal(sample_key, (b, latent), dtype=jnp.float32))

    # pooling matrix: block-diagonal (B, B*S_E) with mask / max(sum(mask),1) entries
    m = embed_mask.astype(jnp.float32)                              # (B, S_E)
    denom = jnp.maximum(jnp.sum(m, axis=1, keepdims=True), 1.0)     # zero-mask guard
    m_norm = m / denom
    pool = bf((jnp.eye(b, dtype=jnp.float32)[:, :, None]
               * m_norm[None, :, :]).reshape(b, n_enc))             # (B, B*S_E)

    # z-row selection matrix: puts z_embed[b] at decoder row b*T + S_P
    z_sel = bf(jnp.zeros((n_dec, b), jnp.float32).at[
        jnp.arange(b) * t_dec + s_p, jnp.arange(b)].set(1.0))       # (B*T, B)

    # tiny attention-mask metadata (dense bias is built in-kernel)
    key_ok = jnp.concatenate(
        [decoder_prefix_mask,
         jnp.ones((b, 1), decoder_prefix_mask.dtype),
         target_mask], axis=1).astype(jnp.int32).reshape(n_dec)     # (B*T,)
    batch_idx = jnp.arange(n_dec, dtype=jnp.int32) // t_dec
    row_batch = batch_idx.reshape(n_dec, 1)                         # (B*T, 1)
    col_info = jnp.stack([batch_idx, key_ok], axis=0)               # (2, B*T)

    # latent weights zero-padded to lane width; q/k/v fused into one weight
    w_mu = jnp.zeros((d, L_PAD), jnp.float32).at[:, :latent].set(params["w_mu"])
    w_dec = jnp.zeros((L_PAD, d), jnp.float32).at[:latent, :].set(params["w_dec"])
    w_qkv = jnp.concatenate([params["wq"], params["wk"], params["wv"]], axis=1)

    logits_flat = pl.pallas_call(
        _vae_router_kernel,
        out_shape=jax.ShapeDtypeStruct((n_dec, v), jnp.float32),
        in_specs=[pl.BlockSpec(memory_space=pltpu.MemorySpace.VMEM)] * 15,
        out_specs=pl.BlockSpec(memory_space=pltpu.MemorySpace.VMEM),
        compiler_params=pltpu.CompilerParams(vmem_limit_bytes=32 << 20),
    )(ids, row_batch, col_info,
      pool, z_sel, eps,
      bf(w_embed), bf(params["w_enc1"]), bf(params["w_enc2"]),
      bf(w_mu), bf(w_dec), bf(w_qkv),
      bf(params["wo"]), bf(params["wup"]), bf(params["wdn"]))

    return logits_flat.reshape(b, t_dec, v)


def init_params(key):
    ks = jax.random.split(key, 11)
    s = 0.02
    return {
        "w_embed": jax.random.normal(ks[0], (V, D), jnp.float32) * s,
        "w_enc1":  jax.random.normal(ks[1], (D, D), jnp.float32) * s,
        "w_enc2":  jax.random.normal(ks[2], (D, D), jnp.float32) * s,
        "w_mu":    jax.random.normal(ks[3], (D, L), jnp.float32) * s,
        "w_dec":   jax.random.normal(ks[4], (L, D), jnp.float32) * s,
        "wq":      jax.random.normal(ks[5], (D, D), jnp.float32) * s,
        "wk":      jax.random.normal(ks[6], (D, D), jnp.float32) * s,
        "wv":      jax.random.normal(ks[7], (D, D), jnp.float32) * s,
        "wo":      jax.random.normal(ks[8], (D, D), jnp.float32) * s,
        "wup":     jax.random.normal(ks[9], (D, FF), jnp.float32) * s,
        "wdn":     jax.random.normal(ks[10], (FF, D), jnp.float32) * s,
    }


if __name__ == "__main__":
    root = jax.random.PRNGKey(0)
    k_params, k_e, k_t, k_p, k_sample = jax.random.split(root, 5)

    B, S_E, S_P, S_T = 2, 8, 7, 8   # decoder seq = 7 + 1 + 8 = 16

    params = init_params(k_params)

    embed_ids = jax.random.randint(k_e, (B, S_E), 0, V, dtype=jnp.int32)
    target_ids = jax.random.randint(k_t, (B, S_T), 0, V, dtype=jnp.int32)
    decoder_prefix_ids = jax.random.randint(k_p, (B, S_P), 0, V,
                                            dtype=jnp.int32)

    embed_mask = jnp.array([[1, 1, 1, 1, 1, 1, 1, 0],
                            [1, 1, 1, 1, 1, 1, 1, 1]], jnp.int32)
    target_mask = jnp.array([[1, 1, 1, 1, 1, 1, 1, 1],
                             [1, 1, 1, 1, 1, 1, 0, 0]], jnp.int32)
    decoder_prefix_mask = jnp.ones((B, S_P), jnp.int32)

    fwd = jax.jit(vae_router_forward)
    logits = fwd(params, embed_ids, embed_mask, target_ids, target_mask,
                 decoder_prefix_ids, decoder_prefix_mask, k_sample)
    jax.block_until_ready(logits)

    assert logits.shape == (B, S_P + 1 + S_T, V)
    assert jnp.all(jnp.isfinite(logits))
    print("KERNEL_OK")
</pallas_src>

<mosaic_0001>
module attributes {stable_mosaic.version = 11 : i64} {
  func.func @_vae_router_kernel(%arg0: memref<48x1xi32, #tpu.memory_space<vmem>>, %arg1: memref<32x1xi32, #tpu.memory_space<vmem>>, %arg2: memref<2x32xi32, #tpu.memory_space<vmem>>, %arg3: memref<2x16xbf16, #tpu.memory_space<vmem>>, %arg4: memref<32x2xbf16, #tpu.memory_space<vmem>>, %arg5: memref<2x128xf32, #tpu.memory_space<vmem>>, %arg6: memref<256x128xbf16, #tpu.memory_space<vmem>>, %arg7: memref<128x128xbf16, #tpu.memory_space<vmem>>, %arg8: memref<128x128xbf16, #tpu.memory_space<vmem>>, %arg9: memref<128x128xbf16, #tpu.memory_space<vmem>>, %arg10: memref<128x128xbf16, #tpu.memory_space<vmem>>, %arg11: memref<128x384xbf16, #tpu.memory_space<vmem>>, %arg12: memref<128x128xbf16, #tpu.memory_space<vmem>>, %arg13: memref<128x512xbf16, #tpu.memory_space<vmem>>, %arg14: memref<512x128xbf16, #tpu.memory_space<vmem>>, %arg15: memref<32x256xf32, #tpu.memory_space<vmem>>) attributes {dimension_semantics = [], scalar_prefetch = 0 : i64, scratch_operands = 0 : i64, tpu.core_type = #tpu.core_type<tc>} {
    %0 = tpu.iota {dimensions = array<i32: 1>} : vector<48x256xi32>
    %c0 = arith.constant 0 : index
    %c0_0 = arith.constant 0 : index
    %1 = vector.load %arg0[%c0, %c0_0] : memref<48x1xi32, #tpu.memory_space<vmem>>, vector<48x1xi32>
    %2 = vector.broadcast %1 : vector<48x1xi32> to vector<48x256xi32>
    %3 = arith.cmpi eq, %2, %0 : vector<48x256xi32>
    %4 = arith.extui %3 : vector<48x256xi1> to vector<48x256xi32>
    %5 = arith.sitofp %4 : vector<48x256xi32> to vector<48x256xf32>
    %6 = arith.truncf %5 : vector<48x256xf32> to vector<48x256xbf16>
    %c0_1 = arith.constant 0 : index
    %c0_2 = arith.constant 0 : index
    %7 = vector.load %arg6[%c0_1, %c0_2] : memref<256x128xbf16, #tpu.memory_space<vmem>>, vector<256x128xbf16>
    %cst = arith.constant dense<0.000000e+00> : vector<48x128xf32>
    %8 = tpu.matmul %6, %7, %cst {dimension_numbers = #tpu.dot_dimension_numbers<[1], [0], [0], [1], [0, 0, 1, 1], [], []>} : vector<48x256xbf16>, vector<256x128xbf16>, vector<48x128xf32> -> vector<48x128xf32>
    %9 = vector.extract_strided_slice %8 {offsets = [0, 0], sizes = [16, 128], strides = [1, 1]} : vector<48x128xf32> to vector<16x128xf32>
    %10 = vector.extract_strided_slice %8 {offsets = [16, 0], sizes = [32, 128], strides = [1, 1]} : vector<48x128xf32> to vector<32x128xf32>
    %11 = arith.truncf %9 : vector<16x128xf32> to vector<16x128xbf16>
    %c0_3 = arith.constant 0 : index
    %c0_4 = arith.constant 0 : index
    %12 = vector.load %arg7[%c0_3, %c0_4] : memref<128x128xbf16, #tpu.memory_space<vmem>>, vector<128x128xbf16>
    %cst_5 = arith.constant dense<0.000000e+00> : vector<16x128xf32>
    %13 = tpu.matmul %11, %12, %cst_5 {dimension_numbers = #tpu.dot_dimension_numbers<[1], [0], [0], [1], [0, 0, 1, 1], [], []>} : vector<16x128xbf16>, vector<128x128xbf16>, vector<16x128xf32> -> vector<16x128xf32>
    %14 = arith.mulf %13, %13 : vector<16x128xf32>
    %15 = arith.mulf %13, %14 : vector<16x128xf32>
    %cst_6 = arith.constant 4.471500e-02 : f32
    %16 = vector.broadcast %cst_6 : f32 to vector<16x128xf32>
    %17 = arith.mulf %16, %15 : vector<16x128xf32>
    %18 = arith.addf %13, %17 : vector<16x128xf32>
    %cst_7 = arith.constant 0.797884583 : f32
    %19 = vector.broadcast %cst_7 : f32 to vector<16x128xf32>
    %20 = arith.mulf %19, %18 : vector<16x128xf32>
    %21 = math.tanh %20 : vector<16x128xf32>
    %cst_8 = arith.constant 1.000000e+00 : f32
    %22 = vector.broadcast %cst_8 : f32 to vector<16x128xf32>
    %23 = arith.addf %22, %21 : vector<16x128xf32>
    %cst_9 = arith.constant 5.000000e-01 : f32
    %24 = vector.broadcast %cst_9 : f32 to vector<16x128xf32>
    %25 = arith.mulf %24, %23 : vector<16x128xf32>
    %26 = arith.mulf %13, %25 : vector<16x128xf32>
    %27 = arith.truncf %26 : vector<16x128xf32> to vector<16x128xbf16>
    %c0_10 = arith.constant 0 : index
    %c0_11 = arith.constant 0 : index
    %28 = vector.load %arg8[%c0_10, %c0_11] : memref<128x128xbf16, #tpu.memory_space<vmem>>, vector<128x128xbf16>
    %cst_12 = arith.constant dense<0.000000e+00> : vector<16x128xf32>
    %29 = tpu.matmul %27, %28, %cst_12 {dimension_numbers = #tpu.dot_dimension_numbers<[1], [0], [0], [1], [0, 0, 1, 1], [], []>} : vector<16x128xbf16>, vector<128x128xbf16>, vector<16x128xf32> -> vector<16x128xf32>
    %30 = arith.addf %29, %9 : vector<16x128xf32>
    %c0_13 = arith.constant 0 : index
    %c0_14 = arith.constant 0 : index
    %31 = vector.load %arg3[%c0_13, %c0_14] : memref<2x16xbf16, #tpu.memory_space<vmem>>, vector<2x16xbf16>
    %32 = arith.truncf %30 : vector<16x128xf32> to vector<16x128xbf16>
    %cst_15 = arith.constant dense<0.000000e+00> : vector<2x128xf32>
    %33 = tpu.matmul %31, %32, %cst_15 {dimension_numbers = #tpu.dot_dimension_numbers<[1], [0], [0], [1], [0, 0, 1, 1], [], []>} : vector<2x16xbf16>, vector<16x128xbf16>, vector<2x128xf32> -> vector<2x128xf32>
    %34 = arith.truncf %33 : vector<2x128xf32> to vector<2x128xbf16>
    %c0_16 = arith.constant 0 : index
    %c0_17 = arith.constant 0 : index
    %35 = vector.load %arg9[%c0_16, %c0_17] : memref<128x128xbf16, #tpu.memory_space<vmem>>, vector<128x128xbf16>
    %cst_18 = arith.constant dense<0.000000e+00> : vector<2x128xf32>
    %36 = tpu.matmul %34, %35, %cst_18 {dimension_numbers = #tpu.dot_dimension_numbers<[1], [0], [0], [1], [0, 0, 1, 1], [], []>} : vector<2x128xbf16>, vector<128x128xbf16>, vector<2x128xf32> -> vector<2x128xf32>
    %c0_19 = arith.constant 0 : index
    %c0_20 = arith.constant 0 : index
    %37 = vector.load %arg5[%c0_19, %c0_20] : memref<2x128xf32, #tpu.memory_space<vmem>>, vector<2x128xf32>
    %38 = arith.addf %36, %37 : vector<2x128xf32>
    %39 = arith.truncf %38 : vector<2x128xf32> to vector<2x128xbf16>
    %c0_21 = arith.constant 0 : index
    %c0_22 = arith.constant 0 : index
    %40 = vector.load %arg10[%c0_21, %c0_22] : memref<128x128xbf16, #tpu.memory_space<vmem>>, vector<128x128xbf16>
    %cst_23 = arith.constant dense<0.000000e+00> : vector<2x128xf32>
    %41 = tpu.matmul %39, %40, %cst_23 {dimension_numbers = #tpu.dot_dimension_numbers<[1], [0], [0], [1], [0, 0, 1, 1], [], []>} : vector<2x128xbf16>, vector<128x128xbf16>, vector<2x128xf32> -> vector<2x128xf32>
    %c0_24 = arith.constant 0 : index
    %c0_25 = arith.constant 0 : index
    %42 = vector.load %arg4[%c0_24, %c0_25] : memref<32x2xbf16, #tpu.memory_space<vmem>>, vector<32x2xbf16>
    %43 = arith.truncf %41 : vector<2x128xf32> to vector<2x128xbf16>
    %cst_26 = arith.constant dense<0.000000e+00> : vector<32x128xf32>
    %44 = tpu.matmul %42, %43, %cst_26 {dimension_numbers = #tpu.dot_dimension_numbers<[1], [0], [0], [1], [0, 0, 1, 1], [], []>} : vector<32x2xbf16>, vector<2x128xbf16>, vector<32x128xf32> -> vector<32x128xf32>
    %45 = arith.addf %10, %44 : vector<32x128xf32>
    %46 = arith.truncf %45 : vector<32x128xf32> to vector<32x128xbf16>
    %c0_27 = arith.constant 0 : index
    %c0_28 = arith.constant 0 : index
    %47 = vector.load %arg11[%c0_27, %c0_28] : memref<128x384xbf16, #tpu.memory_space<vmem>>, vector<128x384xbf16>
    %cst_29 = arith.constant dense<0.000000e+00> : vector<32x384xf32>
    %48 = tpu.matmul %46, %47, %cst_29 {dimension_numbers = #tpu.dot_dimension_numbers<[1], [0], [0], [1], [0, 0, 1, 1], [], []>} : vector<32x128xbf16>, vector<128x384xbf16>, vector<32x384xf32> -> vector<32x384xf32>
    %49 = vector.extract_strided_slice %48 {offsets = [0, 0], sizes = [32, 128], strides = [1, 1]} : vector<32x384xf32> to vector<32x128xf32>
    %50 = vector.extract_strided_slice %48 {offsets = [0, 128], sizes = [32, 128], strides = [1, 1]} : vector<32x384xf32> to vector<32x128xf32>
    %51 = vector.extract_strided_slice %48 {offsets = [0, 256], sizes = [32, 128], strides = [1, 1]} : vector<32x384xf32> to vector<32x128xf32>
    %52 = arith.truncf %49 : vector<32x128xf32> to vector<32x128xbf16>
    %53 = arith.truncf %50 : vector<32x128xf32> to vector<32x128xbf16>
    %cst_30 = arith.constant dense<0.000000e+00> : vector<32x32xf32>
    %54 = tpu.matmul %52, %53, %cst_30 {dimension_numbers = #tpu.dot_dimension_numbers<[1], [1], [0], [0], [0, 0, 1, 0], [], []>} : vector<32x128xbf16>, vector<32x128xbf16>, vector<32x32xf32> -> vector<32x32xf32>
    %cst_31 = arith.constant 0.0883883461 : f32
    %55 = vector.broadcast %cst_31 : f32 to vector<32x32xf32>
    %56 = arith.mulf %54, %55 : vector<32x32xf32>
    %57 = tpu.iota {dimensions = array<i32: 0>} : vector<32x32xi32>
    %58 = tpu.iota {dimensions = array<i32: 1>} : vector<32x32xi32>
    %c0_32 = arith.constant 0 : index
    %c0_33 = arith.constant 0 : index
    %59 = vector.load %arg1[%c0_32, %c0_33] : memref<32x1xi32, #tpu.memory_space<vmem>>, vector<32x1xi32>
    %c0_34 = arith.constant 0 : index
    %c0_35 = arith.constant 0 : index
    %60 = vector.load %arg2[%c0_34, %c0_35] : memref<2x32xi32, #tpu.memory_space<vmem>>, vector<1x32xi32>
    %c1 = arith.constant 1 : index
    %c0_36 = arith.constant 0 : index
    %61 = vector.load %arg2[%c1, %c0_36] : memref<2x32xi32, #tpu.memory_space<vmem>>, vector<1x32xi32>
    %62 = vector.broadcast %59 : vector<32x1xi32> to vector<32x32xi32>
    %63 = vector.broadcast %60 : vector<1x32xi32> to vector<32x32xi32>
    %64 = arith.cmpi eq, %62, %63 : vector<32x32xi32>
    %65 = arith.cmpi sle, %58, %57 : vector<32x32xi32>
    %66 = arith.andi %64, %65 : vector<32x32xi1>
    %c0_i32 = arith.constant 0 : i32
    %67 = vector.broadcast %c0_i32 : i32 to vector<1x32xi32>
    %68 = arith.cmpi sgt, %61, %67 : vector<1x32xi32>
    %69 = vector.broadcast %68 : vector<1x32xi1> to vector<32x32xi1>
    %70 = arith.andi %66, %69 : vector<32x32xi1>
    %cst_37 = arith.constant -1.000000e+30 : f32
    %71 = vector.broadcast %cst_37 : f32 to vector<32x32xf32>
    %72 = arith.select %70, %56, %71 : vector<32x32xi1>, vector<32x32xf32>
    %cst_38 = arith.constant dense<0xFF800000> : vector<32xf32>
    %73 = vector.multi_reduction <maximumf>, %72, %cst_38 [1] : vector<32x32xf32> to vector<32xf32>
    %74 = vector.shape_cast %73 : vector<32xf32> to vector<32x1xf32>
    %75 = vector.broadcast %74 : vector<32x1xf32> to vector<32x32xf32>
    %76 = arith.subf %72, %75 : vector<32x32xf32>
    %77 = math.exp %76 : vector<32x32xf32>
    %cst_39 = arith.constant dense<0.000000e+00> : vector<32xf32>
    %78 = vector.multi_reduction <add>, %77, %cst_39 [1] : vector<32x32xf32> to vector<32xf32>
    %79 = vector.shape_cast %78 : vector<32xf32> to vector<32x1xf32>
    %80 = tpu.reciprocal %79 {approx = true} : vector<32x1xf32> -> vector<32x1xf32>
    %81 = vector.broadcast %80 : vector<32x1xf32> to vector<32x32xf32>
    %82 = arith.mulf %77, %81 : vector<32x32xf32>
    %83 = arith.truncf %82 : vector<32x32xf32> to vector<32x32xbf16>
    %84 = arith.truncf %51 : vector<32x128xf32> to vector<32x128xbf16>
    %cst_40 = arith.constant dense<0.000000e+00> : vector<32x128xf32>
    %85 = tpu.matmul %83, %84, %cst_40 {dimension_numbers = #tpu.dot_dimension_numbers<[1], [0], [0], [1], [0, 0, 1, 1], [], []>} : vector<32x32xbf16>, vector<32x128xbf16>, vector<32x128xf32> -> vector<32x128xf32>
    %86 = arith.truncf %85 : vector<32x128xf32> to vector<32x128xbf16>
    %c0_41 = arith.constant 0 : index
    %c0_42 = arith.constant 0 : index
    %87 = vector.load %arg12[%c0_41, %c0_42] : memref<128x128xbf16, #tpu.memory_space<vmem>>, vector<128x128xbf16>
    %cst_43 = arith.constant dense<0.000000e+00> : vector<32x128xf32>
    %88 = tpu.matmul %86, %87, %cst_43 {dimension_numbers = #tpu.dot_dimension_numbers<[1], [0], [0], [1], [0, 0, 1, 1], [], []>} : vector<32x128xbf16>, vector<128x128xbf16>, vector<32x128xf32> -> vector<32x128xf32>
    %89 = arith.addf %45, %88 : vector<32x128xf32>
    %90 = arith.truncf %89 : vector<32x128xf32> to vector<32x128xbf16>
    %c0_44 = arith.constant 0 : index
    %c0_45 = arith.constant 0 : index
    %91 = vector.load %arg13[%c0_44, %c0_45] : memref<128x512xbf16, #tpu.memory_space<vmem>>, vector<128x512xbf16>
    %cst_46 = arith.constant dense<0.000000e+00> : vector<32x512xf32>
    %92 = tpu.matmul %90, %91, %cst_46 {dimension_numbers = #tpu.dot_dimension_numbers<[1], [0], [0], [1], [0, 0, 1, 1], [], []>} : vector<32x128xbf16>, vector<128x512xbf16>, vector<32x512xf32> -> vector<32x512xf32>
    %93 = arith.mulf %92, %92 : vector<32x512xf32>
    %94 = arith.mulf %92, %93 : vector<32x512xf32>
    %cst_47 = arith.constant 4.471500e-02 : f32
    %95 = vector.broadcast %cst_47 : f32 to vector<32x512xf32>
    %96 = arith.mulf %95, %94 : vector<32x512xf32>
    %97 = arith.addf %92, %96 : vector<32x512xf32>
    %cst_48 = arith.constant 0.797884583 : f32
    %98 = vector.broadcast %cst_48 : f32 to vector<32x512xf32>
    %99 = arith.mulf %98, %97 : vector<32x512xf32>
    %100 = math.tanh %99 : vector<32x512xf32>
    %cst_49 = arith.constant 1.000000e+00 : f32
    %101 = vector.broadcast %cst_49 : f32 to vector<32x512xf32>
    %102 = arith.addf %101, %100 : vector<32x512xf32>
    %cst_50 = arith.constant 5.000000e-01 : f32
    %103 = vector.broadcast %cst_50 : f32 to vector<32x512xf32>
    %104 = arith.mulf %103, %102 : vector<32x512xf32>
    %105 = arith.mulf %92, %104 : vector<32x512xf32>
    %106 = arith.truncf %105 : vector<32x512xf32> to vector<32x512xbf16>
    %c0_51 = arith.constant 0 : index
    %c0_52 = arith.constant 0 : index
    %107 = vector.load %arg14[%c0_51, %c0_52] : memref<512x128xbf16, #tpu.memory_space<vmem>>, vector<512x128xbf16>
    %cst_53 = arith.constant dense<0.000000e+00> : vector<32x128xf32>
    %108 = tpu.matmul %106, %107, %cst_53 {dimension_numbers = #tpu.dot_dimension_numbers<[1], [0], [0], [1], [0, 0, 1, 1], [], []>} : vector<32x512xbf16>, vector<512x128xbf16>, vector<32x128xf32> -> vector<32x128xf32>
    %109 = arith.addf %89, %108 : vector<32x128xf32>
    %110 = arith.truncf %109 : vector<32x128xf32> to vector<32x128xbf16>
    %c0_54 = arith.constant 0 : index
    %c0_55 = arith.constant 0 : index
    %111 = vector.load %arg6[%c0_54, %c0_55] : memref<256x128xbf16, #tpu.memory_space<vmem>>, vector<256x128xbf16>
    %cst_56 = arith.constant dense<0.000000e+00> : vector<32x256xf32>
    %112 = tpu.matmul %110, %111, %cst_56 {dimension_numbers = #tpu.dot_dimension_numbers<[1], [1], [0], [0], [0, 0, 1, 0], [], []>} : vector<32x128xbf16>, vector<256x128xbf16>, vector<32x256xf32> -> vector<32x256xf32>
    %c0_57 = arith.constant 0 : index
    %c0_58 = arith.constant 0 : index
    %113 = vector.load %arg15[%c0_57, %c0_58] : memref<32x256xf32, #tpu.memory_space<vmem>>, vector<32x256xf32>
    tpu.vector_store %arg15[%c0_57, %c0_58], %112 {strides = array<i32>} : memref<32x256xf32, #tpu.memory_space<vmem>>, vector<32x256xf32>,
    return
  }
}

</mosaic_0001>

<llo_original>
// kernel: vae_router_forward.1
$region0: #{vae_router_forward.1}
  #allocation0 [shape = 'u32[]', space=smem, size = 0x4, offset = 0x4, fixed_abs, tag = 'smem constant byte address 0x4 - core index']
  #allocation1 [shape = 'u32[72,128]{1,0:T(1,128)}', space=vmem, size = 0x9000, scoped, tag = 'internal scratch']
  %s0 = inlined_call_operand.vmem [shape: s32[48,1], index: 0, kind: input, shape index: {}]
  %s1 = inlined_call_operand.vmem [shape: s32[32,1], index: 1, kind: input, shape index: {}]
  %s2 = inlined_call_operand.vmem [shape: s32[2,32], index: 2, kind: input, shape index: {}]
  %s3 = inlined_call_operand.vmem [shape: bf16[2,16], index: 3, kind: input, shape index: {}]
  %s4 = inlined_call_operand.vmem [shape: bf16[32,2], index: 4, kind: input, shape index: {}]
  %s5 = inlined_call_operand.vmem [shape: f32[2,128], index: 5, kind: input, shape index: {}]
  %s6 = inlined_call_operand.vmem [shape: bf16[256,128], index: 6, kind: input, shape index: {}]
  %s7 = inlined_call_operand.vmem [shape: bf16[128,128], index: 7, kind: input, shape index: {}]
  %s8 = inlined_call_operand.vmem [shape: bf16[128,128], index: 8, kind: input, shape index: {}]
  %s9 = inlined_call_operand.vmem [shape: bf16[128,128], index: 9, kind: input, shape index: {}]
  %s10 = inlined_call_operand.vmem [shape: bf16[128,128], index: 10, kind: input, shape index: {}]
  %s11 = inlined_call_operand.vmem [shape: bf16[128,384], index: 11, kind: input, shape index: {}]
  %s12 = inlined_call_operand.vmem [shape: bf16[128,128], index: 12, kind: input, shape index: {}]
  %s13 = inlined_call_operand.vmem [shape: bf16[128,512], index: 13, kind: input, shape index: {}]
  %s14 = inlined_call_operand.vmem [shape: bf16[512,128], index: 14, kind: input, shape index: {}]
  %s15 = inlined_call_operand.hbm [shape: f32[32,256], index: 15, kind: output, shape index: {}]
  %s16 = sld [smem:[#allocation0]]
  $region70: #{vae_router_forward.1} parent=0
    _
  %s18 = ssub.s32 1, %s16
  %s19 = scalar_select 0, %s18, %s16
  $region1: #{vae_router_forward.1} parent=0
    #allocation2 [shape = 'u8[32768]{0}', space=vmem, size = 0x8000, scoped, tag = 'output window, operand 0, single buffered']
    #allocation3 [shape = 's32[1]{0}', space=sflag, size = 0x4, scoped, tag = 'scoped memory for vae_router_forward.1']
    %20 = vsyncpa [#allocation3], 0
    // Predicated region
    $region2: #{vae_router_forward.1} parent=1 // pred_check
      _
    $region3: #{vae_router_forward.1} parent=1 // pred_check_branch
      %22 = sbr.rel (0) target = $region5
    $region4: #{vae_router_forward.1} parent=1 // pred_region
      _
    $region5: #{vae_router_forward.1} parent=1 // pred_fallthru
      _
    // Predicated region
    $region6: #{vae_router_forward.1} parent=1 // pred_check
      _
    $region7: #{vae_router_forward.1} parent=1 // pred_check_branch
      %24 = sbr.rel (0) target = $region9
    $region8: #{vae_router_forward.1} parent=1 // pred_region
      _
    $region9: #{vae_router_forward.1} parent=1 // pred_fallthru
      _
    // Predicated region
    $region10: #{vae_router_forward.1} parent=1 // pred_check
      _
    $region11: #{vae_router_forward.1} parent=1 // pred_check_branch
      %26 = sbr.rel (0) target = $region13
    $region12: #{vae_router_forward.1} parent=1 // pred_region
      _
    $region13: #{vae_router_forward.1} parent=1 // pred_fallthru
      _
    // Predicated region
    $region14: #{vae_router_forward.1} parent=1 // pred_check
      _
    $region15: #{vae_router_forward.1} parent=1 // pred_check_branch
      %28 = sbr.rel (0) target = $region17
    $region16: #{vae_router_forward.1} parent=1 // pred_region
      _
    $region17: #{vae_router_forward.1} parent=1 // pred_fallthru
      _
    // Predicated region
    $region18: #{vae_router_forward.1} parent=1 // pred_check
      _
    $region19: #{vae_router_forward.1} parent=1 // pred_check_branch
      %30 = sbr.rel (0) target = $region21
    $region20: #{vae_router_forward.1} parent=1 // pred_region
      _
    $region21: #{vae_router_forward.1} parent=1 // pred_fallthru
      _
    // Predicated region
    $region22: #{vae_router_forward.1} parent=1 // pred_check
      _
    $region23: #{vae_router_forward.1} parent=1 // pred_check_branch
      %32 = sbr.rel (0) target = $region25
    $region24: #{vae_router_forward.1} parent=1 // pred_region
      _
    $region25: #{vae_router_forward.1} parent=1 // pred_fallthru
      _
    // Predicated region
    $region26: #{vae_router_forward.1} parent=1 // pred_check
      _
    $region27: #{vae_router_forward.1} parent=1 // pred_check_branch
      %34 = sbr.rel (0) target = $region29
    $region28: #{vae_router_forward.1} parent=1 // pred_region
      _
    $region29: #{vae_router_forward.1} parent=1 // pred_fallthru
      _
    // Predicated region
    $region30: #{vae_router_forward.1} parent=1 // pred_check
      _
    $region31: #{vae_router_forward.1} parent=1 // pred_check_branch
      %36 = sbr.rel (0) target = $region33
    $region32: #{vae_router_forward.1} parent=1 // pred_region
      _
    $region33: #{vae_router_forward.1} parent=1 // pred_fallthru
      _
    // Predicated region
    $region34: #{vae_router_forward.1} parent=1 // pred_check
      _
    $region35: #{vae_router_forward.1} parent=1 // pred_check_branch
      %38 = sbr.rel (0) target = $region37
    $region36: #{vae_router_forward.1} parent=1 // pred_region
      _
    $region37: #{vae_router_forward.1} parent=1 // pred_fallthru
      _
    // Predicated region
    $region38: #{vae_router_forward.1} parent=1 // pred_check
      _
    $region39: #{vae_router_forward.1} parent=1 // pred_check_branch
      %40 = sbr.rel (0) target = $region41
    $region40: #{vae_router_forward.1} parent=1 // pred_region
      _
    $region41: #{vae_router_forward.1} parent=1 // pred_fallthru
      _
    // Predicated region
    $region42: #{vae_router_forward.1} parent=1 // pred_check
      _
    $region43: #{vae_router_forward.1} parent=1 // pred_check_branch
      %42 = sbr.rel (0) target = $region45
    $region44: #{vae_router_forward.1} parent=1 // pred_region
      _
    $region45: #{vae_router_forward.1} parent=1 // pred_fallthru
      _
    // Predicated region
    $region46: #{vae_router_forward.1} parent=1 // pred_check
      _
    $region47: #{vae_router_forward.1} parent=1 // pred_check_branch
      %44 = sbr.rel (0) target = $region49
    $region48: #{vae_router_forward.1} parent=1 // pred_region
      _
    $region49: #{vae_router_forward.1} parent=1 // pred_fallthru
      _
    // Predicated region
    $region50: #{vae_router_forward.1} parent=1 // pred_check
      _
    $region51: #{vae_router_forward.1} parent=1 // pred_check_branch
      %46 = sbr.rel (0) target = $region53
    $region52: #{vae_router_forward.1} parent=1 // pred_region
      _
    $region53: #{vae_router_forward.1} parent=1 // pred_fallthru
      _
    // Predicated region
    $region54: #{vae_router_forward.1} parent=1 // pred_check
      _
    $region55: #{vae_router_forward.1} parent=1 // pred_check_branch
      %48 = sbr.rel (0) target = $region57
    $region56: #{vae_router_forward.1} parent=1 // pred_region
      _
    $region57: #{vae_router_forward.1} parent=1 // pred_fallthru
      _
    // Predicated region
    $region58: #{vae_router_forward.1} parent=1 // pred_check
      _
    $region59: #{vae_router_forward.1} parent=1 // pred_check_branch
      %50 = sbr.rel (0) target = $region61
    $region60: #{vae_router_forward.1} parent=1 // pred_region
      _
    $region61: #{vae_router_forward.1} parent=1 // pred_fallthru
      _
    %v52 = vlaneseq
    %v53 = vand.u32 %v52, 127
    %v54 = vadd.s32 %v53, 128
    %v55 = vld [vmem:[%s0] sm:$0xff]
    %v56 = vld [vmem:[%s0 + $0x8] sm:$0xff]
    %v57 = vld [vmem:[%s0 + $0x10] sm:$0xff]
    %v58 = vld [vmem:[%s0 + $0x18] sm:$0xff]
    %v59 = vld [vmem:[%s0 + $0x20] sm:$0xff]
    %v60 = vld [vmem:[%s0 + $0x28] sm:$0xff]
    %61 = vset.pattern.permute.xlu0 0
    %62 = vperm.xlu0 %61, %v55
    %v63 = vpop.permute.xlu0 %62
    %64 = vset.pattern.permute.xlu0 0
    %65 = vperm.xlu0 %64, %v56
    %v66 = vpop.permute.xlu0 %65
    %67 = vset.pattern.permute.xlu0 0
    %68 = vperm.xlu0 %67, %v57
    %v69 = vpop.permute.xlu0 %68
    %70 = vset.pattern.permute.xlu0 0
    %71 = vperm.xlu0 %70, %v58
    %v72 = vpop.permute.xlu0 %71
    %73 = vset.pattern.permute.xlu0 0
    %74 = vperm.xlu0 %73, %v59
    %v75 = vpop.permute.xlu0 %74
    %76 = vset.pattern.permute.xlu0 0
    %77 = vperm.xlu0 %76, %v60
    %v78 = vpop.permute.xlu0 %77
    %vm79 = vcmp.eq.s32.totalorder %v63, %v53
    %vm80 = vcmp.eq.s32.totalorder %v63, %v54
    %vm81 = vcmp.eq.s32.totalorder %v66, %v53
    %vm82 = vcmp.eq.s32.totalorder %v66, %v54
    %vm83 = vcmp.eq.s32.totalorder %v69, %v53
    %vm84 = vcmp.eq.s32.totalorder %v69, %v54
    %vm85 = vcmp.eq.s32.totalorder %v72, %v53
    %vm86 = vcmp.eq.s32.totalorder %v72, %v54
    %vm87 = vcmp.eq.s32.totalorder %v75, %v53
    %vm88 = vcmp.eq.s32.totalorder %v75, %v54
    %vm89 = vcmp.eq.s32.totalorder %v78, %v53
    %vm90 = vcmp.eq.s32.totalorder %v78, %v54
    %v91 = vsel %vm79, 1, 0
    %v92 = vsel %vm80, 1, 0
    %v93 = vsel %vm81, 1, 0
    %v94 = vsel %vm82, 1, 0
    %v95 = vsel %vm83, 1, 0
    %v96 = vsel %vm84, 1, 0
    %v97 = vsel %vm85, 1, 0
    %v98 = vsel %vm86, 1, 0
    %v99 = vsel %vm87, 1, 0
    %v100 = vsel %vm88, 1, 0
    %v101 = vsel %vm89, 1, 0
    %v102 = vsel %vm90, 1, 0
    %v103 = vcvt.s32.f32 %v91
    %v104 = vcvt.s32.f32 %v92
    %v105 = vcvt.s32.f32 %v93
    %v106 = vcvt.s32.f32 %v94
    %v107 = vcvt.s32.f32 %v95
    %v108 = vcvt.s32.f32 %v96
    %v109 = vcvt.s32.f32 %v97
    %v110 = vcvt.s32.f32 %v98
    %v111 = vcvt.s32.f32 %v99
    %v112 = vcvt.s32.f32 %v100
    %v113 = vcvt.s32.f32 %v101
    %v114 = vcvt.s32.f32 %v102
    %v115 = vpack.c.bf16 %v105, %v103
    %v116 = vpack.c.bf16 %v106, %v104
    %v117 = vpack.c.bf16 %v109, %v107
    %v118 = vpack.c.bf16 %v110, %v108
    %v119 = vpack.c.bf16 %v113, %v111
    %v120 = vpack.c.bf16 %v114, %v112
    %v121 = vld [vmem:[%s6] sm:$0xf]
    %v122 = vld [vmem:[%s6 + $0x4] sm:$0xf]
    %v123 = vld [vmem:[%s6 + $0x8] sm:$0xf]
    %v124 = vld [vmem:[%s6 + $0xc] sm:$0xf]
    %v125 = vld [vmem:[%s6 + $0x10] sm:$0xf]
    %v126 = vld [vmem:[%s6 + $0x14] sm:$0xf]
    %v127 = vld [vmem:[%s6 + $0x18] sm:$0xf]
    %v128 = vld [vmem:[%s6 + $0x1c] sm:$0xf]
    %v129 = vld [vmem:[%s6 + $0x20] sm:$0xf]
    %v130 = vld [vmem:[%s6 + $0x24] sm:$0xf]
    %v131 = vld [vmem:[%s6 + $0x28] sm:$0xf]
    %v132 = vld [vmem:[%s6 + $0x2c] sm:$0xf]
    %v133 = vld [vmem:[%s6 + $0x30] sm:$0xf]
    %v134 = vld [vmem:[%s6 + $0x34] sm:$0xf]
    %v135 = vld [vmem:[%s6 + $0x38] sm:$0xf]
    %v136 = vld [vmem:[%s6 + $0x3c] sm:$0xf]
    %v137 = vld [vmem:[%s6 + $0x40] sm:$0xf]
    %v138 = vld [vmem:[%s6 + $0x44] sm:$0xf]
    %v139 = vld [vmem:[%s6 + $0x48] sm:$0xf]
    %v140 = vld [vmem:[%s6 + $0x4c] sm:$0xf]
    %v141 = vld [vmem:[%s6 + $0x50] sm:$0xf]
    %v142 = vld [vmem:[%s6 + $0x54] sm:$0xf]
    %v143 = vld [vmem:[%s6 + $0x58] sm:$0xf]
    %v144 = vld [vmem:[%s6 + $0x5c] sm:$0xf]
    %v145 = vld [vmem:[%s6 + $0x60] sm:$0xf]
    %v146 = vld [vmem:[%s6 + $0x64] sm:$0xf]
    %v147 = vld [vmem:[%s6 + $0x68] sm:$0xf]
    %v148 = vld [vmem:[%s6 + $0x6c] sm:$0xf]
    %v149 = vld [vmem:[%s6 + $0x70] sm:$0xf]
    %v150 = vld [vmem:[%s6 + $0x74] sm:$0xf]
    %v151 = vld [vmem:[%s6 + $0x78] sm:$0xf]
    %v152 = vld [vmem:[%s6 + $0x7c] sm:$0xf]
    %v185 = vunpack.c.l.b16 %v121
    %v186 = vunpack.c.l.b16 %v122
    %v187 = vunpack.c.l.b16 %v123
    %v188 = vunpack.c.l.b16 %v124
    %v189 = vunpack.c.l.b16 %v125
    %v190 = vunpack.c.l.b16 %v126
    %v191 = vunpack.c.l.b16 %v127
    %v192 = vunpack.c.l.b16 %v128
    %v193 = vunpack.c.l.b16 %v129
    %v194 = vunpack.c.l.b16 %v130
    %v195 = vunpack.c.l.b16 %v131
    %v196 = vunpack.c.l.b16 %v132
    %v197 = vunpack.c.l.b16 %v133
    %v198 = vunpack.c.l.b16 %v134
    %v199 = vunpack.c.l.b16 %v135
    %v200 = vunpack.c.l.b16 %v136
    %v201 = vunpack.c.l.b16 %v137
    %v202 = vunpack.c.l.b16 %v138
    %v203 = vunpack.c.l.b16 %v139
    %v204 = vunpack.c.l.b16 %v140
    %v205 = vunpack.c.l.b16 %v141
    %v206 = vunpack.c.l.b16 %v142
    %v207 = vunpack.c.l.b16 %v143
    %v208 = vunpack.c.l.b16 %v144
    %v209 = vunpack.c.l.b16 %v145
    %v210 = vunpack.c.l.b16 %v146
    %v211 = vunpack.c.l.b16 %v147
    %v212 = vunpack.c.l.b16 %v148
    %v213 = vunpack.c.l.b16 %v149
    %v214 = vunpack.c.l.b16 %v150
    %v215 = vunpack.c.l.b16 %v151
    %v216 = vunpack.c.l.b16 %v152
    %v217 = vpack.c.b16 %v186, %v185
    %v218 = vpack.c.b16 %v188, %v187
    %v219 = vpack.c.b16 %v190, %v189
    %v220 = vpack.c.b16 %v192, %v191
    %v221 = vpack.c.b16 %v194, %v193
    %v222 = vpack.c.b16 %v196, %v195
    %v223 = vpack.c.b16 %v198, %v197
    %v224 = vpack.c.b16 %v200, %v199
    %v225 = vpack.c.b16 %v202, %v201
    %v226 = vpack.c.b16 %v204, %v203
    %v227 = vpack.c.b16 %v206, %v205
    %v228 = vpack.c.b16 %v208, %v207
    %v229 = vpack.c.b16 %v210, %v209
    %v230 = vpack.c.b16 %v212, %v211
    %v231 = vpack.c.b16 %v214, %v213
    %v232 = vpack.c.b16 %v216, %v215
    %249 = vmatpush.bf16.msra.mxu0 %v224
    %250 = vmatpush.bf16.msra.mxu0 %v223
    %251 = vmatpush.bf16.msra.mxu0 %v222
    %252 = vmatpush.bf16.msra.mxu0 %v221
    %253 = vmatpush.bf16.msra.mxu0 %v220
    %254 = vmatpush.bf16.msra.mxu0 %v219
    %255 = vmatpush.bf16.msra.mxu0 %v218
    %256 = vmatpush.bf16.msra.mxu0 %v217
    %257 = vmatmul.bf16.gmra.mxu0 %v115
    %v258 = vpop.f32.mrf.mxu0
    %v259 = vadd.f32 0.0, %v258
    %v260 = vpop.f32.mrf.mxu0
    %v261 = vadd.f32 0.0, %v260
    %262 = vmatmul.bf16.gmra.mxu0 %v117
    %v263 = vpop.f32.mrf.mxu0
    %v264 = vadd.f32 0.0, %v263
    %v265 = vpop.f32.mrf.mxu0
    %v266 = vadd.f32 0.0, %v265
    %267 = vmatmul.bf16.gmra.mxu0 %v119
    %v268 = vpop.f32.mrf.mxu0
    %v269 = vadd.f32 0.0, %v268
    %v270 = vpop.f32.mrf.mxu0
    %v271 = vadd.f32 0.0, %v270
    %272 = vdwg.mxu0
    %273 = vmatpush.bf16.msra.mxu0 %v232
    %274 = vmatpush.bf16.msra.mxu0 %v231
    %275 = vmatpush.bf16.msra.mxu0 %v230
    %276 = vmatpush.bf16.msra.mxu0 %v229
    %277 = vmatpush.bf16.msra.mxu0 %v228
    %278 = vmatpush.bf16.msra.mxu0 %v227
    %279 = vmatpush.bf16.msra.mxu0 %v226
    %280 = vmatpush.bf16.msra.mxu0 %v225
    %281 = vmatmul.bf16.gmra.mxu0 %v116
    %v282 = vpop.f32.mrf.mxu0
    %v283 = vadd.f32 %v259, %v282
    %v284 = vpop.f32.mrf.mxu0
    %v285 = vadd.f32 %v261, %v284
    %286 = vmatmul.bf16.gmra.mxu0 %v118
    %v287 = vpop.f32.mrf.mxu0
    %v288 = vadd.f32 %v264, %v287
    %v289 = vpop.f32.mrf.mxu0
    %v290 = vadd.f32 %v266, %v289
    %291 = vmatmul.bf16.gmra.mxu0 %v120
    %v292 = vpop.f32.mrf.mxu0
    %v293 = vadd.f32 %v269, %v292
    %v294 = vpop.f32.mrf.mxu0
    %v295 = vadd.f32 %v271, %v294
    %296 = vdwg.mxu0
    %v297 = vpack.c.bf16 %v285, %v283
    %v298 = vld [vmem:[%s7] sm:$0xf]
    %v299 = vld [vmem:[%s7 + $0x4] sm:$0xf]
    %v300 = vld [vmem:[%s7 + $0x8] sm:$0xf]
    %v301 = vld [vmem:[%s7 + $0xc] sm:$0xf]
    %v302 = vld [vmem:[%s7 + $0x10] sm:$0xf]
    %v303 = vld [vmem:[%s7 + $0x14] sm:$0xf]
    %v304 = vld [vmem:[%s7 + $0x18] sm:$0xf]
    %v305 = vld [vmem:[%s7 + $0x1c] sm:$0xf]
    %v306 = vld [vmem:[%s7 + $0x20] sm:$0xf]
    %v307 = vld [vmem:[%s7 + $0x24] sm:$0xf]
    %v308 = vld [vmem:[%s7 + $0x28] sm:$0xf]
    %v309 = vld [vmem:[%s7 + $0x2c] sm:$0xf]
    %v310 = vld [vmem:[%s7 + $0x30] sm:$0xf]
    %v311 = vld [vmem:[%s7 + $0x34] sm:$0xf]
    %v312 = vld [vmem:[%s7 + $0x38] sm:$0xf]
    %v313 = vld [vmem:[%s7 + $0x3c] sm:$0xf]
    %v330 = vunpack.c.l.b16 %v298
    %v331 = vunpack.c.l.b16 %v299
    %v332 = vunpack.c.l.b16 %v300
    %v333 = vunpack.c.l.b16 %v301
    %v334 = vunpack.c.l.b16 %v302
    %v335 = vunpack.c.l.b16 %v303
    %v336 = vunpack.c.l.b16 %v304
    %v337 = vunpack.c.l.b16 %v305
    %v338 = vunpack.c.l.b16 %v306
    %v339 = vunpack.c.l.b16 %v307
    %v340 = vunpack.c.l.b16 %v308
    %v341 = vunpack.c.l.b16 %v309
    %v342 = vunpack.c.l.b16 %v310
    %v343 = vunpack.c.l.b16 %v311
    %v344 = vunpack.c.l.b16 %v312
    %v345 = vunpack.c.l.b16 %v313
    %v346 = vpack.c.b16 %v331, %v330
    %v347 = vpack.c.b16 %v333, %v332
    %v348 = vpack.c.b16 %v335, %v334
    %v349 = vpack.c.b16 %v337, %v336
    %v350 = vpack.c.b16 %v339, %v338
    %v351 = vpack.c.b16 %v341, %v340
    %v352 = vpack.c.b16 %v343, %v342
    %v353 = vpack.c.b16 %v345, %v344
    %362 = vmatpush.bf16.msra.mxu0 %v353
    %363 = vmatpush.bf16.msra.mxu0 %v352
    %364 = vmatpush.bf16.msra.mxu0 %v351
    %365 = vmatpush.bf16.msra.mxu0 %v350
    %366 = vmatpush.bf16.msra.mxu0 %v349
    %367 = vmatpush.bf16.msra.mxu0 %v348
    %368 = vmatpush.bf16.msra.mxu0 %v347
    %369 = vmatpush.bf16.msra.mxu0 %v346
    %370 = vmatmul.bf16.gmra.mxu0 %v297
    %v371 = vpop.f32.mrf.mxu0
    %v372 = vadd.f32 0.0, %v371
    %v373 = vpop.f32.mrf.mxu0
    %v374 = vadd.f32 0.0, %v373
    %375 = vdwg.mxu0
    %v376 = vmul.f32 %v372, %v372
    %v377 = vmul.f32 %v374, %v374
    %v378 = vmul.f32 %v372, %v376
    %v379 = vmul.f32 %v374, %v377
    %v380 = vmul.f32 %v378, 0.044715
    %v381 = vmul.f32 %v379, 0.044715
    %v382 = vadd.f32 %v372, %v380
    %v383 = vadd.f32 %v374, %v381
    %v384 = vmul.f32 %v382, 0.7978846
    %v385 = vmul.f32 %v383, 0.7978846
    %v386 = vtanh.pop %v384
    %v387 = vtanh.pop %v385
    %v388 = vadd.f32 %v386, 1.0
    %v389 = vadd.f32 %v387, 1.0
    %v390 = vmul.f32 %v388, 0.5
    %v391 = vmul.f32 %v389, 0.5
    %v392 = vmul.f32 %v372, %v390
    %v393 = vmul.f32 %v374, %v391
    %v394 = vpack.c.bf16 %v393, %v392
    %v395 = vld [vmem:[%s8] sm:$0xf]
    %v396 = vld [vmem:[%s8 + $0x4] sm:$0xf]
    %v397 = vld [vmem:[%s8 + $0x8] sm:$0xf]
    %v398 = vld [vmem:[%s8 + $0xc] sm:$0xf]
    %v399 = vld [vmem:[%s8 + $0x10] sm:$0xf]
    %v400 = vld [vmem:[%s8 + $0x14] sm:$0xf]
    %v401 = vld [vmem:[%s8 + $0x18] sm:$0xf]
    %v402 = vld [vmem:[%s8 + $0x1c] sm:$0xf]
    %v403 = vld [vmem:[%s8 + $0x20] sm:$0xf]
    %v404 = vld [vmem:[%s8 + $0x24] sm:$0xf]
    %v405 = vld [vmem:[%s8 + $0x28] sm:$0xf]
    %v406 = vld [vmem:[%s8 + $0x2c] sm:$0xf]
    %v407 = vld [vmem:[%s8 + $0x30] sm:$0xf]
    %v408 = vld [vmem:[%s8 + $0x34] sm:$0xf]
    %v409 = vld [vmem:[%s8 + $0x38] sm:$0xf]
    %v410 = vld [vmem:[%s8 + $0x3c] sm:$0xf]
    %v427 = vunpack.c.l.b16 %v395
    %v428 = vunpack.c.l.b16 %v396
    %v429 = vunpack.c.l.b16 %v397
    %v430 = vunpack.c.l.b16 %v398
    %v431 = vunpack.c.l.b16 %v399
    %v432 = vunpack.c.l.b16 %v400
    %v433 = vunpack.c.l.b16 %v401
    %v434 = vunpack.c.l.b16 %v402
    %v435 = vunpack.c.l.b16 %v403
    %v436 = vunpack.c.l.b16 %v404
    %v437 = vunpack.c.l.b16 %v405
    %v438 = vunpack.c.l.b16 %v406
    %v439 = vunpack.c.l.b16 %v407
    %v440 = vunpack.c.l.b16 %v408
    %v441 = vunpack.c.l.b16 %v409
    %v442 = vunpack.c.l.b16 %v410
    %v443 = vpack.c.b16 %v428, %v427
    %v444 = vpack.c.b16 %v430, %v429
    %v445 = vpack.c.b16 %v432, %v431
    %v446 = vpack.c.b16 %v434, %v433
    %v447 = vpack.c.b16 %v436, %v435
    %v448 = vpack.c.b16 %v438, %v437
    %v449 = vpack.c.b16 %v440, %v439
    %v450 = vpack.c.b16 %v442, %v441
    %459 = vmatpush.bf16.msra.mxu0 %v450
    %460 = vmatpush.bf16.msra.mxu0 %v449
    %461 = vmatpush.bf16.msra.mxu0 %v448
    %462 = vmatpush.bf16.msra.mxu0 %v447
    %463 = vmatpush.bf16.msra.mxu0 %v446
    %464 = vmatpush.bf16.msra.mxu0 %v445
    %465 = vmatpush.bf16.msra.mxu0 %v444
    %466 = vmatpush.bf16.msra.mxu0 %v443
    %467 = vmatmul.bf16.gmra.mxu0 %v394
    %v468 = vpop.f32.mrf.mxu0
    %v469 = vadd.f32 %v283, %v468
    %v470 = vpop.f32.mrf.mxu0
    %v471 = vadd.f32 %v285, %v470
    %472 = vdwg.mxu0
    %v473 = vld [vmem:[%s3] sm:$0x1]
    %v474 = vpack.c.bf16 %v471, %v469
    %vm475 = vcmask 130048
    %v477 = vsel %vm475, %v473, 0
    %479 = vmatpush.bf16.msra.mxu0 0
    %480 = vmatpush.bf16.msra.mxu0 0
    %481 = vmatpush.bf16.msra.mxu0 0
    %482 = vmatpush.bf16.msra.mxu0 0
    %483 = vmatpush.bf16.msra.mxu0 0
    %484 = vmatpush.bf16.msra.mxu0 0
    %485 = vmatpush.bf16.msra.mxu0 0
    %486 = vmatpush.bf16.msra.mxu0 %v474
    %487 = vmatmul.bf16.gmra.mxu0 %v477
    %v488 = vpop.f32.mrf.mxu0
    %v489 = vadd.f32 0.0, %v488
    %v490 = vpop.f32.mrf.mxu0
    %491 = vdwg.mxu0
    %v492 = vpack.c.bf16 %v489, %v489
    %v493 = vld [vmem:[%s9] sm:$0xf]
    %v494 = vld [vmem:[%s9 + $0x4] sm:$0xf]
    %v495 = vld [vmem:[%s9 + $0x8] sm:$0xf]
    %v496 = vld [vmem:[%s9 + $0xc] sm:$0xf]
    %v497 = vld [vmem:[%s9 + $0x10] sm:$0xf]
    %v498 = vld [vmem:[%s9 + $0x14] sm:$0xf]
    %v499 = vld [vmem:[%s9 + $0x18] sm:$0xf]
    %v500 = vld [vmem:[%s9 + $0x1c] sm:$0xf]
    %v501 = vld [vmem:[%s9 + $0x20] sm:$0xf]
    %v502 = vld [vmem:[%s9 + $0x24] sm:$0xf]
    %v503 = vld [vmem:[%s9 + $0x28] sm:$0xf]
    %v504 = vld [vmem:[%s9 + $0x2c] sm:$0xf]
    %v505 = vld [vmem:[%s9 + $0x30] sm:$0xf]
    %v506 = vld [vmem:[%s9 + $0x34] sm:$0xf]
    %v507 = vld [vmem:[%s9 + $0x38] sm:$0xf]
    %v508 = vld [vmem:[%s9 + $0x3c] sm:$0xf]
    %v509 = vld [vmem:[%s5] sm:$0x3]
    %v526 = vunpack.c.l.b16 %v493
    %v527 = vunpack.c.l.b16 %v494
    %v528 = vunpack.c.l.b16 %v495
    %v529 = vunpack.c.l.b16 %v496
    %v530 = vunpack.c.l.b16 %v497
    %v531 = vunpack.c.l.b16 %v498
    %v532 = vunpack.c.l.b16 %v499
    %v533 = vunpack.c.l.b16 %v500
    %v534 = vunpack.c.l.b16 %v501
    %v535 = vunpack.c.l.b16 %v502
    %v536 = vunpack.c.l.b16 %v503
    %v537 = vunpack.c.l.b16 %v504
    %v538 = vunpack.c.l.b16 %v505
    %v539 = vunpack.c.l.b16 %v506
    %v540 = vunpack.c.l.b16 %v507
    %v541 = vunpack.c.l.b16 %v508
    %v542 = vpack.c.b16 %v527, %v526
    %v543 = vpack.c.b16 %v529, %v528
    %v544 = vpack.c.b16 %v531, %v530
    %v545 = vpack.c.b16 %v533, %v532
    %v546 = vpack.c.b16 %v535, %v534
    %v547 = vpack.c.b16 %v537, %v536
    %v548 = vpack.c.b16 %v539, %v538
    %v549 = vpack.c.b16 %v541, %v540
    %558 = vmatpush.bf16.msra.mxu0 %v549
    %559 = vmatpush.bf16.msra.mxu0 %v548
    %560 = vmatpush.bf16.msra.mxu0 %v547
    %561 = vmatpush.bf16.msra.mxu0 %v546
    %562 = vmatpush.bf16.msra.mxu0 %v545
    %563 = vmatpush.bf16.msra.mxu0 %v544
    %564 = vmatpush.bf16.msra.mxu0 %v543
    %565 = vmatpush.bf16.msra.mxu0 %v542
    %566 = vmatmul.bf16.gmra.mxu0 %v492
    %v567 = vpop.f32.mrf.mxu0
    %v568 = vadd.f32 %v509, %v567
    %v569 = vpop.f32.mrf.mxu0
    %570 = vdwg.mxu0
    %v571 = vpack.c.bf16 %v568, %v568
    %v572 = vld [vmem:[%s10] sm:$0xf]
    %v573 = vld [vmem:[%s10 + $0x4] sm:$0xf]
    %v574 = vld [vmem:[%s10 + $0x8] sm:$0xf]
    %v575 = vld [vmem:[%s10 + $0xc] sm:$0xf]
    %v576 = vld [vmem:[%s10 + $0x10] sm:$0xf]
    %v577 = vld [vmem:[%s10 + $0x14] sm:$0xf]
    %v578 = vld [vmem:[%s10 + $0x18] sm:$0xf]
    %v579 = vld [vmem:[%s10 + $0x1c] sm:$0xf]
    %v580 = vld [vmem:[%s10 + $0x20] sm:$0xf]
    %v581 = vld [vmem:[%s10 + $0x24] sm:$0xf]
    %v582 = vld [vmem:[%s10 + $0x28] sm:$0xf]
    %v583 = vld [vmem:[%s10 + $0x2c] sm:$0xf]
    %v584 = vld [vmem:[%s10 + $0x30] sm:$0xf]
    %v585 = vld [vmem:[%s10 + $0x34] sm:$0xf]
    %v586 = vld [vmem:[%s10 + $0x38] sm:$0xf]
    %v587 = vld [vmem:[%s10 + $0x3c] sm:$0xf]
    %v604 = vunpack.c.l.b16 %v572
    %v605 = vunpack.c.l.b16 %v573
    %v606 = vunpack.c.l.b16 %v574
    %v607 = vunpack.c.l.b16 %v575
    %v608 = vunpack.c.l.b16 %v576
    %v609 = vunpack.c.l.b16 %v577
    %v610 = vunpack.c.l.b16 %v578
    %v611 = vunpack.c.l.b16 %v579
    %v612 = vunpack.c.l.b16 %v580
    %v613 = vunpack.c.l.b16 %v581
    %v614 = vunpack.c.l.b16 %v582
    %v615 = vunpack.c.l.b16 %v583
    %v616 = vunpack.c.l.b16 %v584
    %v617 = vunpack.c.l.b16 %v585
    %v618 = vunpack.c.l.b16 %v586
    %v619 = vunpack.c.l.b16 %v587
    %v620 = vpack.c.b16 %v605, %v604
    %v621 = vpack.c.b16 %v607, %v606
    %v622 = vpack.c.b16 %v609, %v608
    %v623 = vpack.c.b16 %v611, %v610
    %v624 = vpack.c.b16 %v613, %v612
    %v625 = vpack.c.b16 %v615, %v614
    %v626 = vpack.c.b16 %v617, %v616
    %v627 = vpack.c.b16 %v619, %v618
    %636 = vmatpush.bf16.msra.mxu0 %v627
    %637 = vmatpush.bf16.msra.mxu0 %v626
    %638 = vmatpush.bf16.msra.mxu0 %v625
    %639 = vmatpush.bf16.msra.mxu0 %v624
    %640 = vmatpush.bf16.msra.mxu0 %v623
    %641 = vmatpush.bf16.msra.mxu0 %v622
    %642 = vmatpush.bf16.msra.mxu0 %v621
    %643 = vmatpush.bf16.msra.mxu0 %v620
    %644 = vmatmul.bf16.gmra.mxu0 %v571
    %v645 = vpop.f32.mrf.mxu0
    %v646 = vadd.f32 0.0, %v645
    %v647 = vpop.f32.mrf.mxu0
    %648 = vdwg.mxu0
    %v649 = vld [vmem:[%s4] sm:$0xf]
    %v650 = vld [vmem:[%s4 + $0x4] sm:$0xf]
    %v651 = vld [vmem:[%s4 + $0x8] sm:$0xf]
    %v652 = vld [vmem:[%s4 + $0xc] sm:$0xf]
    %v653 = vpack.c.bf16 %v646, %v646
    %v658 = vunpack.c.l.b16 %v649
    %v659 = vunpack.c.l.b16 %v650
    %v660 = vunpack.c.l.b16 %v651
    %v661 = vunpack.c.l.b16 %v652
    %v662 = vpack.c.b16 %v659, %v658
    %v663 = vpack.c.b16 %v661, %v660
    %vm664 = vcmask 15360
    %v666 = vsel %vm664, %v662, 0
    %v669 = vsel %vm664, %v663, 0
    %vm671 = vcmask 1040384
    %v673 = vsel %vm671, %v653, 0
    %675 = vmatpush.bf16.msra.mxu0 0
    %676 = vmatpush.bf16.msra.mxu0 0
    %677 = vmatpush.bf16.msra.mxu0 0
    %678 = vmatpush.bf16.msra.mxu0 0
    %679 = vmatpush.bf16.msra.mxu0 0
    %680 = vmatpush.bf16.msra.mxu0 0
    %681 = vmatpush.bf16.msra.mxu0 0
    %682 = vmatpush.bf16.msra.mxu0 %v673
    %683 = vmatmul.bf16.gmra.mxu0 %v666
    %v684 = vpop.f32.mrf.mxu0
    %v685 = vadd.f32 0.0, %v684
    %v686 = vpop.f32.mrf.mxu0
    %v687 = vadd.f32 0.0, %v686
    %688 = vmatmul.bf16.gmra.mxu0 %v669
    %v689 = vpop.f32.mrf.mxu0
    %v690 = vadd.f32 0.0, %v689
    %v691 = vpop.f32.mrf.mxu0
    %v692 = vadd.f32 0.0, %v691
    %693 = vdwg.mxu0
    %v694 = vadd.f32 %v288, %v685
    %v695 = vadd.f32 %v290, %v687
    %v696 = vadd.f32 %v293, %v690
    %v697 = vadd.f32 %v295, %v692
    %v698 = vpack.c.bf16 %v695, %v694
    %v699 = vpack.c.bf16 %v697, %v696
    %v700 = vld [vmem:[%s11] sm:$0xff]
    %v701 = vld [vmem:[%s11 + $0x8] sm:$0xf]
    %v702 = vld [vmem:[%s11 + $0xc] sm:$0xff]
    %v703 = vld [vmem:[%s11 + $0x14] sm:$0xf]
    %v704 = vld [vmem:[%s11 + $0x18] sm:$0xff]
    %v705 = vld [vmem:[%s11 + $0x20] sm:$0xf]
    %v706 = vld [vmem:[%s11 + $0x24] sm:$0xff]
    %v707 = vld [vmem:[%s11 + $0x2c] sm:$0xf]
    %v708 = vld [vmem:[%s11 + $0x30] sm:$0xff]
    %v709 = vld [vmem:[%s11 + $0x38] sm:$0xf]
    %v710 = vld [vmem:[%s11 + $0x3c] sm:$0xff]
    %v711 = vld [vmem:[%s11 + $0x44] sm:$0xf]
    %v712 = vld [vmem:[%s11 + $0x48] sm:$0xff]
    %v713 = vld [vmem:[%s11 + $0x50] sm:$0xf]
    %v714 = vld [vmem:[%s11 + $0x54] sm:$0xff]
    %v715 = vld [vmem:[%s11 + $0x5c] sm:$0xf]
    %v716 = vld [vmem:[%s11 + $0x60] sm:$0xff]
    %v717 = vld [vmem:[%s11 + $0x68] sm:$0xf]
    %v718 = vld [vmem:[%s11 + $0x6c] sm:$0xff]
    %v719 = vld [vmem:[%s11 + $0x74] sm:$0xf]
    %v720 = vld [vmem:[%s11 + $0x78] sm:$0xff]
    %v721 = vld [vmem:[%s11 + $0x80] sm:$0xf]
    %v722 = vld [vmem:[%s11 + $0x84] sm:$0xff]
    %v723 = vld [vmem:[%s11 + $0x8c] sm:$0xf]
    %v724 = vld [vmem:[%s11 + $0x90] sm:$0xff]
    %v725 = vld [vmem:[%s11 + $0x98] sm:$0xf]
    %v726 = vld [vmem:[%s11 + $0x9c] sm:$0xff]
    %v727 = vld [vmem:[%s11 + $0xa4] sm:$0xf]
    %v728 = vld [vmem:[%s11 + $0xa8] sm:$0xff]
    %v729 = vld [vmem:[%s11 + $0xb0] sm:$0xf]
    %v730 = vld [vmem:[%s11 + $0xb4] sm:$0xff]
    %v731 = vld [vmem:[%s11 + $0xbc] sm:$0xf]
    %v764 = vunpack.c.l.b16 %v700
    %v765 = vunpack.c.h.b16 %v700
    %v766 = vunpack.c.l.b16 %v701
    %v767 = vunpack.c.l.b16 %v702
    %v768 = vunpack.c.h.b16 %v702
    %v769 = vunpack.c.l.b16 %v703
    %v770 = vunpack.c.l.b16 %v704
    %v771 = vunpack.c.h.b16 %v704
    %v772 = vunpack.c.l.b16 %v705
    %v773 = vunpack.c.l.b16 %v706
    %v774 = vunpack.c.h.b16 %v706
    %v775 = vunpack.c.l.b16 %v707
    %v776 = vunpack.c.l.b16 %v708
    %v777 = vunpack.c.h.b16 %v708
    %v778 = vunpack.c.l.b16 %v709
    %v779 = vunpack.c.l.b16 %v710
    %v780 = vunpack.c.h.b16 %v710
    %v781 = vunpack.c.l.b16 %v711
    %v782 = vunpack.c.l.b16 %v712
    %v783 = vunpack.c.h.b16 %v712
    %v784 = vunpack.c.l.b16 %v713
    %v785 = vunpack.c.l.b16 %v714
    %v786 = vunpack.c.h.b16 %v714
    %v787 = vunpack.c.l.b16 %v715
    %v788 = vunpack.c.l.b16 %v716
    %v789 = vunpack.c.h.b16 %v716
    %v790 = vunpack.c.l.b16 %v717
    %v791 = vunpack.c.l.b16 %v718
    %v792 = vunpack.c.h.b16 %v718
    %v793 = vunpack.c.l.b16 %v719
    %v794 = vunpack.c.l.b16 %v720
    %v795 = vunpack.c.h.b16 %v720
    %v796 = vunpack.c.l.b16 %v721
    %v797 = vunpack.c.l.b16 %v722
    %v798 = vunpack.c.h.b16 %v722
    %v799 = vunpack.c.l.b16 %v723
    %v800 = vunpack.c.l.b16 %v724
    %v801 = vunpack.c.h.b16 %v724
    %v802 = vunpack.c.l.b16 %v725
    %v803 = vunpack.c.l.b16 %v726
    %v804 = vunpack.c.h.b16 %v726
    %v805 = vunpack.c.l.b16 %v727
    %v806 = vunpack.c.l.b16 %v728
    %v807 = vunpack.c.h.b16 %v728
    %v808 = vunpack.c.l.b16 %v729
    %v809 = vunpack.c.l.b16 %v730
    %v810 = vunpack.c.h.b16 %v730
    %v811 = vunpack.c.l.b16 %v731
    %v812 = vpack.c.b16 %v767, %v764
    %v813 = vpack.c.b16 %v768, %v765
    %v814 = vpack.c.b16 %v769, %v766
    %v815 = vpack.c.b16 %v773, %v770
    %v816 = vpack.c.b16 %v774, %v771
    %v817 = vpack.c.b16 %v775, %v772
    %v818 = vpack.c.b16 %v779, %v776
    %v819 = vpack.c.b16 %v780, %v777
    %v820 = vpack.c.b16 %v781, %v778
    %v821 = vpack.c.b16 %v785, %v782
    %v822 = vpack.c.b16 %v786, %v783
    %v823 = vpack.c.b16 %v787, %v784
    %v824 = vpack.c.b16 %v791, %v788
    %v825 = vpack.c.b16 %v792, %v789
    %v826 = vpack.c.b16 %v793, %v790
    %v827 = vpack.c.b16 %v797, %v794
    %v828 = vpack.c.b16 %v798, %v795
    %v829 = vpack.c.b16 %v799, %v796
    %v830 = vpack.c.b16 %v803, %v800
    %v831 = vpack.c.b16 %v804, %v801
    %v832 = vpack.c.b16 %v805, %v802
    %v833 = vpack.c.b16 %v809, %v806
    %v834 = vpack.c.b16 %v810, %v807
    %v835 = vpack.c.b16 %v811, %v808
    %860 = vmatpush.bf16.msra.mxu0 %v833
    %861 = vmatpush.bf16.msra.mxu0 %v830
    %862 = vmatpush.bf16.msra.mxu0 %v827
    %863 = vmatpush.bf16.msra.mxu0 %v824
    %864 = vmatpush.bf16.msra.mxu0 %v821
    %865 = vmatpush.bf16.msra.mxu0 %v818
    %866 = vmatpush.bf16.msra.mxu0 %v815
    %867 = vmatpush.bf16.msra.mxu0 %v812
    %868 = vmatmul.bf16.gmra.mxu0 %v698
    %v869 = vpop.f32.mrf.mxu0
    %v870 = vadd.f32 0.0, %v869
    %v871 = vpop.f32.mrf.mxu0
    %v872 = vadd.f32 0.0, %v871
    %873 = vmatmul.bf16.gmra.mxu0 %v699
    %v874 = vpop.f32.mrf.mxu0
    %v875 = vadd.f32 0.0, %v874
    %v876 = vpop.f32.mrf.mxu0
    %v877 = vadd.f32 0.0, %v876
    %878 = vdwg.mxu0
    %879 = vmatpush.bf16.msra.mxu0 %v834
    %880 = vmatpush.bf16.msra.mxu0 %v831
    %881 = vmatpush.bf16.msra.mxu0 %v828
    %882 = vmatpush.bf16.msra.mxu0 %v825
    %883 = vmatpush.bf16.msra.mxu0 %v822
    %884 = vmatpush.bf16.msra.mxu0 %v819
    %885 = vmatpush.bf16.msra.mxu0 %v816
    %886 = vmatpush.bf16.msra.mxu0 %v813
    %887 = vmatmul.bf16.gmra.mxu0 %v698
    %v888 = vpop.f32.mrf.mxu0
    %v889 = vadd.f32 0.0, %v888
    %v890 = vpop.f32.mrf.mxu0
    %v891 = vadd.f32 0.0, %v890
    %892 = vmatmul.bf16.gmra.mxu0 %v699
    %v893 = vpop.f32.mrf.mxu0
    %v894 = vadd.f32 0.0, %v893
    %v895 = vpop.f32.mrf.mxu0
    %v896 = vadd.f32 0.0, %v895
    %897 = vdwg.mxu0
    %898 = vmatpush.bf16.msra.mxu0 %v835
    %899 = vmatpush.bf16.msra.mxu0 %v832
    %900 = vmatpush.bf16.msra.mxu0 %v829
    %901 = vmatpush.bf16.msra.mxu0 %v826
    %902 = vmatpush.bf16.msra.mxu0 %v823
    %903 = vmatpush.bf16.msra.mxu0 %v820
    %904 = vmatpush.bf16.msra.mxu0 %v817
    %905 = vmatpush.bf16.msra.mxu0 %v814
    %906 = vmatmul.bf16.gmra.mxu0 %v698
    %v907 = vpop.f32.mrf.mxu0
    %v908 = vadd.f32 0.0, %v907
    %v909 = vpop.f32.mrf.mxu0
    %v910 = vadd.f32 0.0, %v909
    %911 = vmatmul.bf16.gmra.mxu0 %v699
    %v912 = vpop.f32.mrf.mxu0
    %v913 = vadd.f32 0.0, %v912
    %v914 = vpop.f32.mrf.mxu0
    %v915 = vadd.f32 0.0, %v914
    %916 = vdwg.mxu0
    %v917 = vpack.c.bf16 %v872, %v870
    %v918 = vpack.c.bf16 %v877, %v875
    %v919 = vpack.c.bf16 %v891, %v889
    %v920 = vpack.c.bf16 %v896, %v894
    %921 = vmatpush.bf16.xpose.msra.mxu0 0
    %922 = vmatpush.bf16.xpose.msra.mxu0 0
    %923 = vmatpush.bf16.xpose.msra.mxu0 0
    %924 = vmatpush.bf16.xpose.msra.mxu0 0
    %925 = vmatpush.bf16.xpose.msra.mxu0 0
    %926 = vmatpush.bf16.xpose.msra.mxu0 0
    %927 = vmatpush.bf16.xpose.msra.mxu0 %v920
    %928 = vmatpush.bf16.xpose.msra.mxu0 %v919
    %929 = vmatmul.bf16.gmra.mxu0 %v917
    %v930 = vpop.f32.mrf.mxu0
    %v931 = vadd.f32 0.0, %v930
    %v932 = vpop.f32.mrf.mxu0
    %v933 = vadd.f32 0.0, %v932
    %934 = vmatmul.bf16.gmra.mxu0 %v918
    %v935 = vpop.f32.mrf.mxu0
    %v936 = vadd.f32 0.0, %v935
    %v937 = vpop.f32.mrf.mxu0
    %v938 = vadd.f32 0.0, %v937
    %939 = vdwg.mxu0
    %v940 = vmul.f32 %v931, 0.088388346
    %v941 = vmul.f32 %v933, 0.088388346
    %v942 = vmul.f32 %v936, 0.088388346
    %v943 = vmul.f32 %v938, 0.088388346
    %v944 = vlaneseq
    %v945 = vshrl.u32 %v944, 7
    %v946 = vadd.s32 %v945, 8
    %v947 = vadd.s32 %v945, 16
    %v948 = vadd.s32 %v945, 24
    %v949 = vld [vmem:[%s1] sm:$0xff]
    %v950 = vld [vmem:[%s1 + $0x8] sm:$0xff]
    %v951 = vld [vmem:[%s1 + $0x10] sm:$0xff]
    %v952 = vld [vmem:[%s1 + $0x18] sm:$0xff]
    %v953 = vld [vmem:[%s2] sm:$0x1]
    %v954 = vld [vmem:[%s2 + $0x1] sm:$0x1]
    %955 = vset.pattern.permute.xlu0 0
    %956 = vperm.xlu0 %955, %v949
    %v957 = vpop.permute.xlu0 %956
    %958 = vset.pattern.permute.xlu0 0
    %959 = vperm.xlu0 %958, %v950
    %v960 = vpop.permute.xlu0 %959
    %961 = vset.pattern.permute.xlu0 0
    %962 = vperm.xlu0 %961, %v951
    %v963 = vpop.permute.xlu0 %962
    %964 = vset.pattern.permute.xlu0 0
    %965 = vperm.xlu0 %964, %v952
    %v966 = vpop.permute.xlu0 %965
    %v967 = vperm.slane %v953, 0
    %vm968 = vcmp.eq.s32.totalorder %v957, %v967
    %vm969 = vcmp.eq.s32.totalorder %v960, %v967
    %vm970 = vcmp.eq.s32.totalorder %v963, %v967
    %vm971 = vcmp.eq.s32.totalorder %v966, %v967
    %vm972 = vcmp.le.s32.totalorder %v53, %v945
    %vm973 = vcmp.le.s32.totalorder %v53, %v946
    %vm974 = vcmp.le.s32.totalorder %v53, %v947
    %vm975 = vcmp.le.s32.totalorder %v53, %v948
    %vm976 = vmand %vm968, %vm972
    %vm977 = vmand %vm969, %vm973
    %vm978 = vmand %vm970, %vm974
    %vm979 = vmand %vm971, %vm975
    %vm980 = vcmp.gt.s32.totalorder %v954, 0
    %v981 = vsel %vm980, 1, 0
    %v982 = vperm.slane %v981, 0
    %vm983 = vcmp.eq.s32.totalorder %v982, 1
    %vm984 = vmand %vm976, %vm983
    %vm985 = vmand %vm977, %vm983
    %vm986 = vmand %vm978, %vm983
    %vm987 = vmand %vm979, %vm983
    %v988 = vsel %vm984, %v940, -1e+30
    %v989 = vsel %vm985, %v941, -1e+30
    %v990 = vsel %vm986, %v942, -1e+30
    %v991 = vsel %vm987, %v943, -1e+30
    %vm992 = vcmask 261120
    %v993 = vsel %vm992, %v988, -inf
    %994 = vmax.xlane.f32.xlu0 %v993
    %v995 = vpop.xlane.xlu0 %994
    %v996 = vsel %vm992, %v989, -inf
    %997 = vmax.xlane.f32.xlu0 %v996
    %v998 = vpop.xlane.xlu0 %997
    %v999 = vsel %vm992, %v990, -inf
    %1000 = vmax.xlane.f32.xlu0 %v999
    %v1001 = vpop.xlane.xlu0 %1000
    %v1002 = vsel %vm992, %v991, -inf
    %1003 = vmax.xlane.f32.xlu0 %v1002
    %v1004 = vpop.xlane.xlu0 %1003
    %v1005 = vsub.f32 %v988, %v995
    %v1006 = vsub.f32 %v989, %v998
    %v1007 = vsub.f32 %v990, %v1001
    %v1008 = vsub.f32 %v991, %v1004
    %v1009 = vmul.f32 %v1005, 1.442695
    %v1010 = vpow.pop %v1009
    %v1011 = vmul.f32 %v1006, 1.442695
    %v1012 = vpow.pop %v1011
    %v1013 = vmul.f32 %v1007, 1.442695
    %v1014 = vpow.pop %v1013
    %v1015 = vmul.f32 %v1008, 1.442695
    %v1016 = vpow.pop %v1015
    %v1017 = vsel %vm992, %v1010, 0.0
    %1018 = vadd.xlane.f32.xlu0 %v1017
    %v1019 = vpop.xlane.xlu0 %1018
    %v1020 = vsel %vm992, %v1012, 0.0
    %1021 = vadd.xlane.f32.xlu0 %v1020
    %v1022 = vpop.xlane.xlu0 %1021
    %v1023 = vsel %vm992, %v1014, 0.0
    %1024 = vadd.xlane.f32.xlu0 %v1023
    %v1025 = vpop.xlane.xlu0 %1024
    %v1026 = vsel %vm992, %v1016, 0.0
    %1027 = vadd.xlane.f32.xlu0 %v1026
    %v1028 = vpop.xlane.xlu0 %1027
    %v1029 = vrcp.pop %v1019
    %v1030 = vrcp.pop %v1022
    %v1031 = vrcp.pop %v1025
    %v1032 = vrcp.pop %v1028
    %v1033 = vmul.f32 %v1010, %v1029
    %v1034 = vmul.f32 %v1012, %v1030
    %v1035 = vmul.f32 %v1014, %v1031
    %v1036 = vmul.f32 %v1016, %v1032
    %v1037 = vpack.c.bf16 %v1034, %v1033
    %v1038 = vpack.c.bf16 %v1036, %v1035
    %v1039 = vpack.c.bf16 %v910, %v908
    %v1040 = vpack.c.bf16 %v915, %v913
    %v1042 = vsel %vm992, %v1037, 0
    %v1045 = vsel %vm992, %v1038, 0
    %1047 = vmatpush.bf16.msra.mxu0 0
    %1048 = vmatpush.bf16.msra.mxu0 0
    %1049 = vmatpush.bf16.msra.mxu0 0
    %1050 = vmatpush.bf16.msra.mxu0 0
    %1051 = vmatpush.bf16.msra.mxu0 0
    %1052 = vmatpush.bf16.msra.mxu0 0
    %1053 = vmatpush.bf16.msra.mxu0 %v1040
    %1054 = vmatpush.bf16.msra.mxu0 %v1039
    %1055 = vmatmul.bf16.gmra.mxu0 %v1042
    %v1056 = vpop.f32.mrf.mxu0
    %v1057 = vadd.f32 0.0, %v1056
    %v1058 = vpop.f32.mrf.mxu0
    %v1059 = vadd.f32 0.0, %v1058
    %1060 = vmatmul.bf16.gmra.mxu0 %v1045
    %v1061 = vpop.f32.mrf.mxu0
    %v1062 = vadd.f32 0.0, %v1061
    %v1063 = vpop.f32.mrf.mxu0
    %v1064 = vadd.f32 0.0, %v1063
    %1065 = vdwg.mxu0
    %v1066 = vpack.c.bf16 %v1059, %v1057
    %v1067 = vpack.c.bf16 %v1064, %v1062
    %v1068 = vld [vmem:[%s12] sm:$0xf]
    %v1069 = vld [vmem:[%s12 + $0x4] sm:$0xf]
    %v1070 = vld [vmem:[%s12 + $0x8] sm:$0xf]
    %v1071 = vld [vmem:[%s12 + $0xc] sm:$0xf]
    %v1072 = vld [vmem:[%s12 + $0x10] sm:$0xf]
    %v1073 = vld [vmem:[%s12 + $0x14] sm:$0xf]
    %v1074 = vld [vmem:[%s12 + $0x18] sm:$0xf]
    %v1075 = vld [vmem:[%s12 + $0x1c] sm:$0xf]
    %v1076 = vld [vmem:[%s12 + $0x20] sm:$0xf]
    %v1077 = vld [vmem:[%s12 + $0x24] sm:$0xf]
    %v1078 = vld [vmem:[%s12 + $0x28] sm:$0xf]
    %v1079 = vld [vmem:[%s12 + $0x2c] sm:$0xf]
    %v1080 = vld [vmem:[%s12 + $0x30] sm:$0xf]
    %v1081 = vld [vmem:[%s12 + $0x34] sm:$0xf]
    %v1082 = vld [vmem:[%s12 + $0x38] sm:$0xf]
    %v1083 = vld [vmem:[%s12 + $0x3c] sm:$0xf]
    %v1100 = vunpack.c.l.b16 %v1068
    %v1101 = vunpack.c.l.b16 %v1069
    %v1102 = vunpack.c.l.b16 %v1070
    %v1103 = vunpack.c.l.b16 %v1071
    %v1104 = vunpack.c.l.b16 %v1072
    %v1105 = vunpack.c.l.b16 %v1073
    %v1106 = vunpack.c.l.b16 %v1074
    %v1107 = vunpack.c.l.b16 %v1075
    %v1108 = vunpack.c.l.b16 %v1076
    %v1109 = vunpack.c.l.b16 %v1077
    %v1110 = vunpack.c.l.b16 %v1078
    %v1111 = vunpack.c.l.b16 %v1079
    %v1112 = vunpack.c.l.b16 %v1080
    %v1113 = vunpack.c.l.b16 %v1081
    %v1114 = vunpack.c.l.b16 %v1082
    %v1115 = vunpack.c.l.b16 %v1083
    %v1116 = vpack.c.b16 %v1101, %v1100
    %v1117 = vpack.c.b16 %v1103, %v1102
    %v1118 = vpack.c.b16 %v1105, %v1104
    %v1119 = vpack.c.b16 %v1107, %v1106
    %v1120 = vpack.c.b16 %v1109, %v1108
    %v1121 = vpack.c.b16 %v1111, %v1110
    %v1122 = vpack.c.b16 %v1113, %v1112
    %v1123 = vpack.c.b16 %v1115, %v1114
    %1132 = vmatpush.bf16.msra.mxu0 %v1123
    %1133 = vmatpush.bf16.msra.mxu0 %v1122
    %1134 = vmatpush.bf16.msra.mxu0 %v1121
    %1135 = vmatpush.bf16.msra.mxu0 %v1120
    %1136 = vmatpush.bf16.msra.mxu0 %v1119
    %1137 = vmatpush.bf16.msra.mxu0 %v1118
    %1138 = vmatpush.bf16.msra.mxu0 %v1117
    %1139 = vmatpush.bf16.msra.mxu0 %v1116
    %1140 = vmatmul.bf16.gmra.mxu0 %v1066
    %v1141 = vpop.f32.mrf.mxu0
    %v1142 = vadd.f32 0.0, %v1141
    %v1143 = vpop.f32.mrf.mxu0
    %v1144 = vadd.f32 0.0, %v1143
    %1145 = vmatmul.bf16.gmra.mxu0 %v1067
    %v1146 = vpop.f32.mrf.mxu0
    %v1147 = vadd.f32 0.0, %v1146
    %v1148 = vpop.f32.mrf.mxu0
    %v1149 = vadd.f32 0.0, %v1148
    %1150 = vdwg.mxu0
    %v1151 = vadd.f32 %v694, %v1142
    %v1152 = vadd.f32 %v695, %v1144
    %v1153 = vadd.f32 %v696, %v1147
    %v1154 = vadd.f32 %v697, %v1149
    %v1155 = vpack.c.bf16 %v1152, %v1151
    %v1156 = vpack.c.bf16 %v1154, %v1153
    %v1157 = vld [vmem:[%s13] sm:$0xff]
    %v1158 = vld [vmem:[%s13 + $0x8] sm:$0xff]
    %v1159 = vld [vmem:[%s13 + $0x10] sm:$0xff]
    %v1160 = vld [vmem:[%s13 + $0x18] sm:$0xff]
    %v1161 = vld [vmem:[%s13 + $0x20] sm:$0xff]
    %v1162 = vld [vmem:[%s13 + $0x28] sm:$0xff]
    %v1163 = vld [vmem:[%s13 + $0x30] sm:$0xff]
    %v1164 = vld [vmem:[%s13 + $0x38] sm:$0xff]
    %v1165 = vld [vmem:[%s13 + $0x40] sm:$0xff]
    %v1166 = vld [vmem:[%s13 + $0x48] sm:$0xff]
    %v1167 = vld [vmem:[%s13 + $0x50] sm:$0xff]
    %v1168 = vld [vmem:[%s13 + $0x58] sm:$0xff]
    %v1169 = vld [vmem:[%s13 + $0x60] sm:$0xff]
    %v1170 = vld [vmem:[%s13 + $0x68] sm:$0xff]
    %v1171 = vld [vmem:[%s13 + $0x70] sm:$0xff]
    %v1172 = vld [vmem:[%s13 + $0x78] sm:$0xff]
    %v1173 = vld [vmem:[%s13 + $0x80] sm:$0xff]
    %v1174 = vld [vmem:[%s13 + $0x88] sm:$0xff]
    %v1175 = vld [vmem:[%s13 + $0x90] sm:$0xff]
    %v1176 = vld [vmem:[%s13 + $0x98] sm:$0xff]
    %v1177 = vld [vmem:[%s13 + $0xa0] sm:$0xff]
    %v1178 = vld [vmem:[%s13 + $0xa8] sm:$0xff]
    %v1179 = vld [vmem:[%s13 + $0xb0] sm:$0xff]
    %v1180 = vld [vmem:[%s13 + $0xb8] sm:$0xff]
    %v1181 = vld [vmem:[%s13 + $0xc0] sm:$0xff]
    %v1182 = vld [vmem:[%s13 + $0xc8] sm:$0xff]
    %v1183 = vld [vmem:[%s13 + $0xd0] sm:$0xff]
    %v1184 = vld [vmem:[%s13 + $0xd8] sm:$0xff]
    %v1185 = vld [vmem:[%s13 + $0xe0] sm:$0xff]
    %v1186 = vld [vmem:[%s13 + $0xe8] sm:$0xff]
    %v1187 = vld [vmem:[%s13 + $0xf0] sm:$0xff]
    %v1188 = vld [vmem:[%s13 + $0xf8] sm:$0xff]
    %v1221 = vunpack.c.l.b16 %v1157
    %v1222 = vunpack.c.h.b16 %v1157
    %v1223 = vunpack.c.l.b16 %v1158
    %v1224 = vunpack.c.h.b16 %v1158
    %v1225 = vunpack.c.l.b16 %v1159
    %v1226 = vunpack.c.h.b16 %v1159
    %v1227 = vunpack.c.l.b16 %v1160
    %v1228 = vunpack.c.h.b16 %v1160
    %v1229 = vunpack.c.l.b16 %v1161
    %v1230 = vunpack.c.h.b16 %v1161
    %v1231 = vunpack.c.l.b16 %v1162
    %v1232 = vunpack.c.h.b16 %v1162
    %v1233 = vunpack.c.l.b16 %v1163
    %v1234 = vunpack.c.h.b16 %v1163
    %v1235 = vunpack.c.l.b16 %v1164
    %v1236 = vunpack.c.h.b16 %v1164
    %v1237 = vunpack.c.l.b16 %v1165
    %v1238 = vunpack.c.h.b16 %v1165
    %v1239 = vunpack.c.l.b16 %v1166
    %v1240 = vunpack.c.h.b16 %v1166
    %v1241 = vunpack.c.l.b16 %v1167
    %v1242 = vunpack.c.h.b16 %v1167
    %v1243 = vunpack.c.l.b16 %v1168
    %v1244 = vunpack.c.h.b16 %v1168
    %v1245 = vunpack.c.l.b16 %v1169
    %v1246 = vunpack.c.h.b16 %v1169
    %v1247 = vunpack.c.l.b16 %v1170
    %v1248 = vunpack.c.h.b16 %v1170
    %v1249 = vunpack.c.l.b16 %v1171
    %v1250 = vunpack.c.h.b16 %v1171
    %v1251 = vunpack.c.l.b16 %v1172
    %v1252 = vunpack.c.h.b16 %v1172
    %v1253 = vunpack.c.l.b16 %v1173
    %v1254 = vunpack.c.h.b16 %v1173
    %v1255 = vunpack.c.l.b16 %v1174
    %v1256 = vunpack.c.h.b16 %v1174
    %v1257 = vunpack.c.l.b16 %v1175
    %v1258 = vunpack.c.h.b16 %v1175
    %v1259 = vunpack.c.l.b16 %v1176
    %v1260 = vunpack.c.h.b16 %v1176
    %v1261 = vunpack.c.l.b16 %v1177
    %v1262 = vunpack.c.h.b16 %v1177
    %v1263 = vunpack.c.l.b16 %v1178
    %v1264 = vunpack.c.h.b16 %v1178
    %v1265 = vunpack.c.l.b16 %v1179
    %v1266 = vunpack.c.h.b16 %v1179
    %v1267 = vunpack.c.l.b16 %v1180
    %v1268 = vunpack.c.h.b16 %v1180
    %v1269 = vunpack.c.l.b16 %v1181
    %v1270 = vunpack.c.h.b16 %v1181
    %v1271 = vunpack.c.l.b16 %v1182
    %v1272 = vunpack.c.h.b16 %v1182
    %v1273 = vunpack.c.l.b16 %v1183
    %v1274 = vunpack.c.h.b16 %v1183
    %v1275 = vunpack.c.l.b16 %v1184
    %v1276 = vunpack.c.h.b16 %v1184
    %v1277 = vunpack.c.l.b16 %v1185
    %v1278 = vunpack.c.h.b16 %v1185
    %v1279 = vunpack.c.l.b16 %v1186
    %v1280 = vunpack.c.h.b16 %v1186
    %v1281 = vunpack.c.l.b16 %v1187
    %v1282 = vunpack.c.h.b16 %v1187
    %v1283 = vunpack.c.l.b16 %v1188
    %v1284 = vunpack.c.h.b16 %v1188
    %v1285 = vpack.c.b16 %v1225, %v1221
    %v1286 = vpack.c.b16 %v1226, %v1222
    %v1287 = vpack.c.b16 %v1227, %v1223
    %v1288 = vpack.c.b16 %v1228, %v1224
    %v1289 = vpack.c.b16 %v1233, %v1229
    %v1290 = vpack.c.b16 %v1234, %v1230
    %v1291 = vpack.c.b16 %v1235, %v1231
    %v1292 = vpack.c.b16 %v1236, %v1232
    %v1293 = vpack.c.b16 %v1241, %v1237
    %v1294 = vpack.c.b16 %v1242, %v1238
    %v1295 = vpack.c.b16 %v1243, %v1239
    %v1296 = vpack.c.b16 %v1244, %v1240
    %v1297 = vpack.c.b16 %v1249, %v1245
    %v1298 = vpack.c.b16 %v1250, %v1246
    %v1299 = vpack.c.b16 %v1251, %v1247
    %v1300 = vpack.c.b16 %v1252, %v1248
    %v1301 = vpack.c.b16 %v1257, %v1253
    %v1302 = vpack.c.b16 %v1258, %v1254
    %v1303 = vpack.c.b16 %v1259, %v1255
    %v1304 = vpack.c.b16 %v1260, %v1256
    %v1305 = vpack.c.b16 %v1265, %v1261
    %v1306 = vpack.c.b16 %v1266, %v1262
    %v1307 = vpack.c.b16 %v1267, %v1263
    %v1308 = vpack.c.b16 %v1268, %v1264
    %v1309 = vpack.c.b16 %v1273, %v1269
    %v1310 = vpack.c.b16 %v1274, %v1270
    %v1311 = vpack.c.b16 %v1275, %v1271
    %v1312 = vpack.c.b16 %v1276, %v1272
    %v1313 = vpack.c.b16 %v1281, %v1277
    %v1314 = vpack.c.b16 %v1282, %v1278
    %v1315 = vpack.c.b16 %v1283, %v1279
    %v1316 = vpack.c.b16 %v1284, %v1280
    %1349 = vmatpush.bf16.msra.mxu0 %v1313
    %1350 = vmatpush.bf16.msra.mxu0 %v1309
    %1351 = vmatpush.bf16.msra.mxu0 %v1305
    %1352 = vmatpush.bf16.msra.mxu0 %v1301
    %1353 = vmatpush.bf16.msra.mxu0 %v1297
    %1354 = vmatpush.bf16.msra.mxu0 %v1293
    %1355 = vmatpush.bf16.msra.mxu0 %v1289
    %1356 = vmatpush.bf16.msra.mxu0 %v1285
    %1357 = vmatmul.bf16.gmra.mxu0 %v1155
    %v1358 = vpop.f32.mrf.mxu0
    %v1359 = vadd.f32 0.0, %v1358
    %v1360 = vpop.f32.mrf.mxu0
    %v1361 = vadd.f32 0.0, %v1360
    %1362 = vmatmul.bf16.gmra.mxu0 %v1156
    %v1363 = vpop.f32.mrf.mxu0
    %v1364 = vadd.f32 0.0, %v1363
    %v1365 = vpop.f32.mrf.mxu0
    %v1366 = vadd.f32 0.0, %v1365
    %1367 = vdwg.mxu0
    %1368 = vmatpush.bf16.msra.mxu0 %v1314
    %1369 = vmatpush.bf16.msra.mxu0 %v1310
    %1370 = vmatpush.bf16.msra.mxu0 %v1306
    %1371 = vmatpush.bf16.msra.mxu0 %v1302
    %1372 = vmatpush.bf16.msra.mxu0 %v1298
    %1373 = vmatpush.bf16.msra.mxu0 %v1294
    %1374 = vmatpush.bf16.msra.mxu0 %v1290
    %1375 = vmatpush.bf16.msra.mxu0 %v1286
    %1376 = vmatmul.bf16.gmra.mxu0 %v1155
    %v1377 = vpop.f32.mrf.mxu0
    %v1378 = vadd.f32 0.0, %v1377
    %v1379 = vpop.f32.mrf.mxu0
    %v1380 = vadd.f32 0.0, %v1379
    %1381 = vmatmul.bf16.gmra.mxu0 %v1156
    %v1382 = vpop.f32.mrf.mxu0
    %v1383 = vadd.f32 0.0, %v1382
    %v1384 = vpop.f32.mrf.mxu0
    %v1385 = vadd.f32 0.0, %v1384
    %1386 = vdwg.mxu0
    %1387 = vmatpush.bf16.msra.mxu0 %v1315
    %1388 = vmatpush.bf16.msra.mxu0 %v1311
    %1389 = vmatpush.bf16.msra.mxu0 %v1307
    %1390 = vmatpush.bf16.msra.mxu0 %v1303
    %1391 = vmatpush.bf16.msra.mxu0 %v1299
    %1392 = vmatpush.bf16.msra.mxu0 %v1295
    %1393 = vmatpush.bf16.msra.mxu0 %v1291
    %1394 = vmatpush.bf16.msra.mxu0 %v1287
    %1395 = vmatmul.bf16.gmra.mxu0 %v1155
    %v1396 = vpop.f32.mrf.mxu0
    %v1397 = vadd.f32 0.0, %v1396
    %v1398 = vpop.f32.mrf.mxu0
    %v1399 = vadd.f32 0.0, %v1398
    %1400 = vmatmul.bf16.gmra.mxu0 %v1156
    %v1401 = vpop.f32.mrf.mxu0
    %v1402 = vadd.f32 0.0, %v1401
    %v1403 = vpop.f32.mrf.mxu0
    %v1404 = vadd.f32 0.0, %v1403
    %1405 = vdwg.mxu0
    %1406 = vmatpush.bf16.msra.mxu0 %v1316
    %1407 = vmatpush.bf16.msra.mxu0 %v1312
    %1408 = vmatpush.bf16.msra.mxu0 %v1308
    %1409 = vmatpush.bf16.msra.mxu0 %v1304
    %1410 = vmatpush.bf16.msra.mxu0 %v1300
    %1411 = vmatpush.bf16.msra.mxu0 %v1296
    %1412 = vmatpush.bf16.msra.mxu0 %v1292
    %1413 = vmatpush.bf16.msra.mxu0 %v1288
    %1414 = vmatmul.bf16.gmra.mxu0 %v1155
    %v1415 = vpop.f32.mrf.mxu0
    %v1416 = vadd.f32 0.0, %v1415
    %v1417 = vpop.f32.mrf.mxu0
    %v1418 = vadd.f32 0.0, %v1417
    %1419 = vmatmul.bf16.gmra.mxu0 %v1156
    %v1420 = vpop.f32.mrf.mxu0
    %v1421 = vadd.f32 0.0, %v1420
    %v1422 = vpop.f32.mrf.mxu0
    %v1423 = vadd.f32 0.0, %v1422
    %1424 = vdwg.mxu0
    %v1425 = vmul.f32 %v1359, %v1359
    %v1426 = vmul.f32 %v1378, %v1378
    %v1427 = vmul.f32 %v1397, %v1397
    %v1428 = vmul.f32 %v1416, %v1416
    %v1429 = vmul.f32 %v1361, %v1361
    %v1430 = vmul.f32 %v1380, %v1380
    %v1431 = vmul.f32 %v1399, %v1399
    %v1432 = vmul.f32 %v1418, %v1418
    %v1433 = vmul.f32 %v1364, %v1364
    %v1434 = vmul.f32 %v1383, %v1383
    %v1435 = vmul.f32 %v1402, %v1402
    %v1436 = vmul.f32 %v1421, %v1421
    %v1437 = vmul.f32 %v1366, %v1366
    %v1438 = vmul.f32 %v1385, %v1385
    %v1439 = vmul.f32 %v1404, %v1404
    %v1440 = vmul.f32 %v1423, %v1423
    %v1441 = vmul.f32 %v1359, %v1425
    %v1442 = vmul.f32 %v1378, %v1426
    %v1443 = vmul.f32 %v1397, %v1427
    %v1444 = vmul.f32 %v1416, %v1428
    %v1445 = vmul.f32 %v1361, %v1429
    %v1446 = vmul.f32 %v1380, %v1430
    %v1447 = vmul.f32 %v1399, %v1431
    %v1448 = vmul.f32 %v1418, %v1432
    %v1449 = vmul.f32 %v1364, %v1433
    %v1450 = vmul.f32 %v1383, %v1434
    %v1451 = vmul.f32 %v1402, %v1435
    %v1452 = vmul.f32 %v1421, %v1436
    %v1453 = vmul.f32 %v1366, %v1437
    %v1454 = vmul.f32 %v1385, %v1438
    %v1455 = vmul.f32 %v1404, %v1439
    %v1456 = vmul.f32 %v1423, %v1440
    %v1457 = vmul.f32 %v1441, 0.044715
    %v1458 = vmul.f32 %v1442, 0.044715
    %v1459 = vmul.f32 %v1443, 0.044715
    %v1460 = vmul.f32 %v1444, 0.044715
    %v1461 = vmul.f32 %v1445, 0.044715
    %v1462 = vmul.f32 %v1446, 0.044715
    %v1463 = vmul.f32 %v1447, 0.044715
    %v1464 = vmul.f32 %v1448, 0.044715
    %v1465 = vmul.f32 %v1449, 0.044715
    %v1466 = vmul.f32 %v1450, 0.044715
    %v1467 = vmul.f32 %v1451, 0.044715
    %v1468 = vmul.f32 %v1452, 0.044715
    %v1469 = vmul.f32 %v1453, 0.044715
    %v1470 = vmul.f32 %v1454, 0.044715
    %v1471 = vmul.f32 %v1455, 0.044715
    %v1472 = vmul.f32 %v1456, 0.044715
    %v1473 = vadd.f32 %v1359, %v1457
    %v1474 = vadd.f32 %v1378, %v1458
    %v1475 = vadd.f32 %v1397, %v1459
    %v1476 = vadd.f32 %v1416, %v1460
    %v1477 = vadd.f32 %v1361, %v1461
    %v1478 = vadd.f32 %v1380, %v1462
    %v1479 = vadd.f32 %v1399, %v1463
    %v1480 = vadd.f32 %v1418, %v1464
    %v1481 = vadd.f32 %v1364, %v1465
    %v1482 = vadd.f32 %v1383, %v1466
    %v1483 = vadd.f32 %v1402, %v1467
    %v1484 = vadd.f32 %v1421, %v1468
    %v1485 = vadd.f32 %v1366, %v1469
    %v1486 = vadd.f32 %v1385, %v1470
    %v1487 = vadd.f32 %v1404, %v1471
    %v1488 = vadd.f32 %v1423, %v1472
    %v1489 = vmul.f32 %v1473, 0.7978846
    %v1490 = vmul.f32 %v1474, 0.7978846
    %v1491 = vmul.f32 %v1475, 0.7978846
    %v1492 = vmul.f32 %v1476, 0.7978846
    %v1493 = vmul.f32 %v1477, 0.7978846
    %v1494 = vmul.f32 %v1478, 0.7978846
    %v1495 = vmul.f32 %v1479, 0.7978846
    %v1496 = vmul.f32 %v1480, 0.7978846
    %v1497 = vmul.f32 %v1481, 0.7978846
    %v1498 = vmul.f32 %v1482, 0.7978846
    %v1499 = vmul.f32 %v1483, 0.7978846
    %v1500 = vmul.f32 %v1484, 0.7978846
    %v1501 = vmul.f32 %v1485, 0.7978846
    %v1502 = vmul.f32 %v1486, 0.7978846
    %v1503 = vmul.f32 %v1487, 0.7978846
    %v1504 = vmul.f32 %v1488, 0.7978846
    %v1505 = vtanh.pop %v1489
    %v1506 = vtanh.pop %v1490
    %v1507 = vtanh.pop %v1491
    %v1508 = vtanh.pop %v1492
    %v1509 = vtanh.pop %v1493
    %v1510 = vtanh.pop %v1494
    %v1511 = vtanh.pop %v1495
    %v1512 = vtanh.pop %v1496
    %v1513 = vtanh.pop %v1497
    %v1514 = vtanh.pop %v1498
    %v1515 = vtanh.pop %v1499
    %v1516 = vtanh.pop %v1500
    %v1517 = vtanh.pop %v1501
    %v1518 = vtanh.pop %v1502
    %v1519 = vtanh.pop %v1503
    %v1520 = vtanh.pop %v1504
    %v1521 = vadd.f32 %v1505, 1.0
    %v1522 = vadd.f32 %v1506, 1.0
    %v1523 = vadd.f32 %v1507, 1.0
    %v1524 = vadd.f32 %v1508, 1.0
    %v1525 = vadd.f32 %v1509, 1.0
    %v1526 = vadd.f32 %v1510, 1.0
    %v1527 = vadd.f32 %v1511, 1.0
    %v1528 = vadd.f32 %v1512, 1.0
    %v1529 = vadd.f32 %v1513, 1.0
    %v1530 = vadd.f32 %v1514, 1.0
    %v1531 = vadd.f32 %v1515, 1.0
    %v1532 = vadd.f32 %v1516, 1.0
    %v1533 = vadd.f32 %v1517, 1.0
    %v1534 = vadd.f32 %v1518, 1.0
    %v1535 = vadd.f32 %v1519, 1.0
    %v1536 = vadd.f32 %v1520, 1.0
    %v1537 = vmul.f32 %v1521, 0.5
    %v1538 = vmul.f32 %v1522, 0.5
    %v1539 = vmul.f32 %v1523, 0.5
    %v1540 = vmul.f32 %v1524, 0.5
    %v1541 = vmul.f32 %v1525, 0.5
    %v1542 = vmul.f32 %v1526, 0.5
    %v1543 = vmul.f32 %v1527, 0.5
    %v1544 = vmul.f32 %v1528, 0.5
    %v1545 = vmul.f32 %v1529, 0.5
    %v1546 = vmul.f32 %v1530, 0.5
    %v1547 = vmul.f32 %v1531, 0.5
    %v1548 = vmul.f32 %v1532, 0.5
    %v1549 = vmul.f32 %v1533, 0.5
    %v1550 = vmul.f32 %v1534, 0.5
    %v1551 = vmul.f32 %v1535, 0.5
    %v1552 = vmul.f32 %v1536, 0.5
    %v1553 = vmul.f32 %v1359, %v1537
    %v1554 = vmul.f32 %v1378, %v1538
    %v1555 = vmul.f32 %v1397, %v1539
    %v1556 = vmul.f32 %v1416, %v1540
    %v1557 = vmul.f32 %v1361, %v1541
    %v1558 = vmul.f32 %v1380, %v1542
    %v1559 = vmul.f32 %v1399, %v1543
    %v1560 = vmul.f32 %v1418, %v1544
    %v1561 = vmul.f32 %v1364, %v1545
    %v1562 = vmul.f32 %v1383, %v1546
    %v1563 = vmul.f32 %v1402, %v1547
    %v1564 = vmul.f32 %v1421, %v1548
    %v1565 = vmul.f32 %v1366, %v1549
    %v1566 = vmul.f32 %v1385, %v1550
    %v1567 = vmul.f32 %v1404, %v1551
    %v1568 = vmul.f32 %v1423, %v1552
    %v1569 = vpack.c.bf16 %v1557, %v1553
    %v1570 = vpack.c.bf16 %v1558, %v1554
    %v1571 = vpack.c.bf16 %v1559, %v1555
    %v1572 = vpack.c.bf16 %v1560, %v1556
    %v1573 = vpack.c.bf16 %v1565, %v1561
    %v1574 = vpack.c.bf16 %v1566, %v1562
    %v1575 = vpack.c.bf16 %v1567, %v1563
    %v1576 = vpack.c.bf16 %v1568, %v1564
    %v1577 = vld [vmem:[%s14] sm:$0xf]
    %v1578 = vld [vmem:[%s14 + $0x4] sm:$0xf]
    %v1579 = vld [vmem:[%s14 + $0x8] sm:$0xf]
    %v1580 = vld [vmem:[%s14 + $0xc] sm:$0xf]
    %v1581 = vld [vmem:[%s14 + $0x10] sm:$0xf]
    %v1582 = vld [vmem:[%s14 + $0x14] sm:$0xf]
    %v1583 = vld [vmem:[%s14 + $0x18] sm:$0xf]
    %v1584 = vld [vmem:[%s14 + $0x1c] sm:$0xf]
    %v1585 = vld [vmem:[%s14 + $0x20] sm:$0xf]
    %v1586 = vld [vmem:[%s14 + $0x24] sm:$0xf]
    %v1587 = vld [vmem:[%s14 + $0x28] sm:$0xf]
    %v1588 = vld [vmem:[%s14 + $0x2c] sm:$0xf]
    %v1589 = vld [vmem:[%s14 + $0x30] sm:$0xf]
    %v1590 = vld [vmem:[%s14 + $0x34] sm:$0xf]
    %v1591 = vld [vmem:[%s14 + $0x38] sm:$0xf]
    %v1592 = vld [vmem:[%s14 + $0x3c] sm:$0xf]
    %v1593 = vld [vmem:[%s14 + $0x40] sm:$0xf]
    %v1594 = vld [vmem:[%s14 + $0x44] sm:$0xf]
    %v1595 = vld [vmem:[%s14 + $0x48] sm:$0xf]
    %v1596 = vld [vmem:[%s14 + $0x4c] sm:$0xf]
    %v1597 = vld [vmem:[%s14 + $0x50] sm:$0xf]
    %v1598 = vld [vmem:[%s14 + $0x54] sm:$0xf]
    %v1599 = vld [vmem:[%s14 + $0x58] sm:$0xf]
    %v1600 = vld [vmem:[%s14 + $0x5c] sm:$0xf]
    %v1601 = vld [vmem:[%s14 + $0x60] sm:$0xf]
    %v1602 = vld [vmem:[%s14 + $0x64] sm:$0xf]
    %v1603 = vld [vmem:[%s14 + $0x68] sm:$0xf]
    %v1604 = vld [vmem:[%s14 + $0x6c] sm:$0xf]
    %v1605 = vld [vmem:[%s14 + $0x70] sm:$0xf]
    %v1606 = vld [vmem:[%s14 + $0x74] sm:$0xf]
    %v1607 = vld [vmem:[%s14 + $0x78] sm:$0xf]
    %v1608 = vld [vmem:[%s14 + $0x7c] sm:$0xf]
    %v1609 = vld [vmem:[%s14 + $0x80] sm:$0xf]
    %v1610 = vld [vmem:[%s14 + $0x84] sm:$0xf]
    %v1611 = vld [vmem:[%s14 + $0x88] sm:$0xf]
    %v1612 = vld [vmem:[%s14 + $0x8c] sm:$0xf]
    %v1613 = vld [vmem:[%s14 + $0x90] sm:$0xf]
    %v1614 = vld [vmem:[%s14 + $0x94] sm:$0xf]
    %v1615 = vld [vmem:[%s14 + $0x98] sm:$0xf]
    %v1616 = vld [vmem:[%s14 + $0x9c] sm:$0xf]
    %v1617 = vld [vmem:[%s14 + $0xa0] sm:$0xf]
    %v1618 = vld [vmem:[%s14 + $0xa4] sm:$0xf]
    %v1619 = vld [vmem:[%s14 + $0xa8] sm:$0xf]
    %v1620 = vld [vmem:[%s14 + $0xac] sm:$0xf]
    %v1621 = vld [vmem:[%s14 + $0xb0] sm:$0xf]
    %v1622 = vld [vmem:[%s14 + $0xb4] sm:$0xf]
    %v1623 = vld [vmem:[%s14 + $0xb8] sm:$0xf]
    %v1624 = vld [vmem:[%s14 + $0xbc] sm:$0xf]
    %v1625 = vld [vmem:[%s14 + $0xc0] sm:$0xf]
    %v1626 = vld [vmem:[%s14 + $0xc4] sm:$0xf]
    %v1627 = vld [vmem:[%s14 + $0xc8] sm:$0xf]
    %v1628 = vld [vmem:[%s14 + $0xcc] sm:$0xf]
    %v1629 = vld [vmem:[%s14 + $0xd0] sm:$0xf]
    %v1630 = vld [vmem:[%s14 + $0xd4] sm:$0xf]
    %v1631 = vld [vmem:[%s14 + $0xd8] sm:$0xf]
    %v1632 = vld [vmem:[%s14 + $0xdc] sm:$0xf]
    %v1633 = vld [vmem:[%s14 + $0xe0] sm:$0xf]
    %v1634 = vld [vmem:[%s14 + $0xe4] sm:$0xf]
    %v1635 = vld [vmem:[%s14 + $0xe8] sm:$0xf]
    %v1636 = vld [vmem:[%s14 + $0xec] sm:$0xf]
    %v1637 = vld [vmem:[%s14 + $0xf0] sm:$0xf]
    %v1638 = vld [vmem:[%s14 + $0xf4] sm:$0xf]
    %v1639 = vld [vmem:[%s14 + $0xf8] sm:$0xf]
    %v1640 = vld [vmem:[%s14 + $0xfc] sm:$0xf]
    %v1705 = vunpack.c.l.b16 %v1577
    %v1706 = vunpack.c.l.b16 %v1578
    %v1707 = vunpack.c.l.b16 %v1579
    %v1708 = vunpack.c.l.b16 %v1580
    %v1709 = vunpack.c.l.b16 %v1581
    %v1710 = vunpack.c.l.b16 %v1582
    %v1711 = vunpack.c.l.b16 %v1583
    %v1712 = vunpack.c.l.b16 %v1584
    %v1713 = vunpack.c.l.b16 %v1585
    %v1714 = vunpack.c.l.b16 %v1586
    %v1715 = vunpack.c.l.b16 %v1587
    %v1716 = vunpack.c.l.b16 %v1588
    %v1717 = vunpack.c.l.b16 %v1589
    %v1718 = vunpack.c.l.b16 %v1590
    %v1719 = vunpack.c.l.b16 %v1591
    %v1720 = vunpack.c.l.b16 %v1592
    %v1721 = vunpack.c.l.b16 %v1593
    %v1722 = vunpack.c.l.b16 %v1594
    %v1723 = vunpack.c.l.b16 %v1595
    %v1724 = vunpack.c.l.b16 %v1596
    %v1725 = vunpack.c.l.b16 %v1597
    %v1726 = vunpack.c.l.b16 %v1598
    %v1727 = vunpack.c.l.b16 %v1599
    %v1728 = vunpack.c.l.b16 %v1600
    %v1729 = vunpack.c.l.b16 %v1601
    %v1730 = vunpack.c.l.b16 %v1602
    %v1731 = vunpack.c.l.b16 %v1603
    %v1732 = vunpack.c.l.b16 %v1604
    %v1733 = vunpack.c.l.b16 %v1605
    %v1734 = vunpack.c.l.b16 %v1606
    %v1735 = vunpack.c.l.b16 %v1607
    %v1736 = vunpack.c.l.b16 %v1608
    %v1737 = vunpack.c.l.b16 %v1609
    %v1738 = vunpack.c.l.b16 %v1610
    %v1739 = vunpack.c.l.b16 %v1611
    %v1740 = vunpack.c.l.b16 %v1612
    %v1741 = vunpack.c.l.b16 %v1613
    %v1742 = vunpack.c.l.b16 %v1614
    %v1743 = vunpack.c.l.b16 %v1615
    %v1744 = vunpack.c.l.b16 %v1616
    %v1745 = vunpack.c.l.b16 %v1617
    %v1746 = vunpack.c.l.b16 %v1618
    %v1747 = vunpack.c.l.b16 %v1619
    %v1748 = vunpack.c.l.b16 %v1620
    %v1749 = vunpack.c.l.b16 %v1621
    %v1750 = vunpack.c.l.b16 %v1622
    %v1751 = vunpack.c.l.b16 %v1623
    %v1752 = vunpack.c.l.b16 %v1624
    %v1753 = vunpack.c.l.b16 %v1625
    %v1754 = vunpack.c.l.b16 %v1626
    %v1755 = vunpack.c.l.b16 %v1627
    %v1756 = vunpack.c.l.b16 %v1628
    %v1757 = vunpack.c.l.b16 %v1629
    %v1758 = vunpack.c.l.b16 %v1630
    %v1759 = vunpack.c.l.b16 %v1631
    %v1760 = vunpack.c.l.b16 %v1632
    %v1761 = vunpack.c.l.b16 %v1633
    %v1762 = vunpack.c.l.b16 %v1634
    %v1763 = vunpack.c.l.b16 %v1635
    %v1764 = vunpack.c.l.b16 %v1636
    %v1765 = vunpack.c.l.b16 %v1637
    %v1766 = vunpack.c.l.b16 %v1638
    %v1767 = vunpack.c.l.b16 %v1639
    %v1768 = vunpack.c.l.b16 %v1640
    %v1769 = vpack.c.b16 %v1706, %v1705
    %v1770 = vpack.c.b16 %v1708, %v1707
    %v1771 = vpack.c.b16 %v1710, %v1709
    %v1772 = vpack.c.b16 %v1712, %v1711
    %v1773 = vpack.c.b16 %v1714, %v1713
    %v1774 = vpack.c.b16 %v1716, %v1715
    %v1775 = vpack.c.b16 %v1718, %v1717
    %v1776 = vpack.c.b16 %v1720, %v1719
    %v1777 = vpack.c.b16 %v1722, %v1721
    %v1778 = vpack.c.b16 %v1724, %v1723
    %v1779 = vpack.c.b16 %v1726, %v1725
    %v1780 = vpack.c.b16 %v1728, %v1727
    %v1781 = vpack.c.b16 %v1730, %v1729
    %v1782 = vpack.c.b16 %v1732, %v1731
    %v1783 = vpack.c.b16 %v1734, %v1733
    %v1784 = vpack.c.b16 %v1736, %v1735
    %v1785 = vpack.c.b16 %v1738, %v1737
    %v1786 = vpack.c.b16 %v1740, %v1739
    %v1787 = vpack.c.b16 %v1742, %v1741
    %v1788 = vpack.c.b16 %v1744, %v1743
    %v1789 = vpack.c.b16 %v1746, %v1745
    %v1790 = vpack.c.b16 %v1748, %v1747
    %v1791 = vpack.c.b16 %v1750, %v1749
    %v1792 = vpack.c.b16 %v1752, %v1751
    %v1793 = vpack.c.b16 %v1754, %v1753
    %v1794 = vpack.c.b16 %v1756, %v1755
    %v1795 = vpack.c.b16 %v1758, %v1757
    %v1796 = vpack.c.b16 %v1760, %v1759
    %v1797 = vpack.c.b16 %v1762, %v1761
    %v1798 = vpack.c.b16 %v1764, %v1763
    %v1799 = vpack.c.b16 %v1766, %v1765
    %v1800 = vpack.c.b16 %v1768, %v1767
    %1833 = vmatpush.bf16.msra.mxu0 %v1776
    %1834 = vmatpush.bf16.msra.mxu0 %v1775
    %1835 = vmatpush.bf16.msra.mxu0 %v1774
    %1836 = vmatpush.bf16.msra.mxu0 %v1773
    %1837 = vmatpush.bf16.msra.mxu0 %v1772
    %1838 = vmatpush.bf16.msra.mxu0 %v1771
    %1839 = vmatpush.bf16.msra.mxu0 %v1770
    %1840 = vmatpush.bf16.msra.mxu0 %v1769
    %1841 = vmatmul.bf16.gmra.mxu0 %v1569
    %v1842 = vpop.f32.mrf.mxu0
    %v1843 = vadd.f32 0.0, %v1842
    %v1844 = vpop.f32.mrf.mxu0
    %v1845 = vadd.f32 0.0, %v1844
    %1846 = vmatmul.bf16.gmra.mxu0 %v1573
    %v1847 = vpop.f32.mrf.mxu0
    %v1848 = vadd.f32 0.0, %v1847
    %v1849 = vpop.f32.mrf.mxu0
    %v1850 = vadd.f32 0.0, %v1849
    %1851 = vdwg.mxu0
    %1852 = vmatpush.bf16.msra.mxu0 %v1784
    %1853 = vmatpush.bf16.msra.mxu0 %v1783
    %1854 = vmatpush.bf16.msra.mxu0 %v1782
    %1855 = vmatpush.bf16.msra.mxu0 %v1781
    %1856 = vmatpush.bf16.msra.mxu0 %v1780
    %1857 = vmatpush.bf16.msra.mxu0 %v1779
    %1858 = vmatpush.bf16.msra.mxu0 %v1778
    %1859 = vmatpush.bf16.msra.mxu0 %v1777
    %1860 = vmatmul.bf16.gmra.mxu0 %v1570
    %v1861 = vpop.f32.mrf.mxu0
    %v1862 = vadd.f32 %v1843, %v1861
    %v1863 = vpop.f32.mrf.mxu0
    %v1864 = vadd.f32 %v1845, %v1863
    %1865 = vmatmul.bf16.gmra.mxu0 %v1574
    %v1866 = vpop.f32.mrf.mxu0
    %v1867 = vadd.f32 %v1848, %v1866
    %v1868 = vpop.f32.mrf.mxu0
    %v1869 = vadd.f32 %v1850, %v1868
    %1870 = vdwg.mxu0
    %1871 = vmatpush.bf16.msra.mxu0 %v1792
    %1872 = vmatpush.bf16.msra.mxu0 %v1791
    %1873 = vmatpush.bf16.msra.mxu0 %v1790
    %1874 = vmatpush.bf16.msra.mxu0 %v1789
    %1875 = vmatpush.bf16.msra.mxu0 %v1788
    %1876 = vmatpush.bf16.msra.mxu0 %v1787
    %1877 = vmatpush.bf16.msra.mxu0 %v1786
    %1878 = vmatpush.bf16.msra.mxu0 %v1785
    %1879 = vmatmul.bf16.gmra.mxu0 %v1571
    %v1880 = vpop.f32.mrf.mxu0
    %v1881 = vadd.f32 %v1862, %v1880
    %v1882 = vpop.f32.mrf.mxu0
    %v1883 = vadd.f32 %v1864, %v1882
    %1884 = vmatmul.bf16.gmra.mxu0 %v1575
    %v1885 = vpop.f32.mrf.mxu0
    %v1886 = vadd.f32 %v1867, %v1885
    %v1887 = vpop.f32.mrf.mxu0
    %v1888 = vadd.f32 %v1869, %v1887
    %1889 = vdwg.mxu0
    %1890 = vmatpush.bf16.msra.mxu0 %v1800
    %1891 = vmatpush.bf16.msra.mxu0 %v1799
    %1892 = vmatpush.bf16.msra.mxu0 %v1798
    %1893 = vmatpush.bf16.msra.mxu0 %v1797
    %1894 = vmatpush.bf16.msra.mxu0 %v1796
    %1895 = vmatpush.bf16.msra.mxu0 %v1795
    %1896 = vmatpush.bf16.msra.mxu0 %v1794
    %1897 = vmatpush.bf16.msra.mxu0 %v1793
    %1898 = vmatmul.bf16.gmra.mxu0 %v1572
    %v1899 = vpop.f32.mrf.mxu0
    %v1900 = vadd.f32 %v1881, %v1899
    %v1901 = vpop.f32.mrf.mxu0
    %v1902 = vadd.f32 %v1883, %v1901
    %1903 = vmatmul.bf16.gmra.mxu0 %v1576
    %v1904 = vpop.f32.mrf.mxu0
    %v1905 = vadd.f32 %v1886, %v1904
    %v1906 = vpop.f32.mrf.mxu0
    %v1907 = vadd.f32 %v1888, %v1906
    %1908 = vdwg.mxu0
    %v1909 = vadd.f32 %v1151, %v1900
    %v1910 = vadd.f32 %v1152, %v1902
    %v1911 = vadd.f32 %v1153, %v1905
    %v1912 = vadd.f32 %v1154, %v1907
    %v1913 = vpack.c.bf16 %v1910, %v1909
    %v1914 = vpack.c.bf16 %v1912, %v1911
    %1915 = vmatpush.bf16.xpose.msra.mxu0 %v224
    %1916 = vmatpush.bf16.xpose.msra.mxu0 %v223
    %1917 = vmatpush.bf16.xpose.msra.mxu0 %v222
    %1918 = vmatpush.bf16.xpose.msra.mxu0 %v221
    %1919 = vmatpush.bf16.xpose.msra.mxu0 %v220
    %1920 = vmatpush.bf16.xpose.msra.mxu0 %v219
    %1921 = vmatpush.bf16.xpose.msra.mxu0 %v218
    %1922 = vmatpush.bf16.xpose.msra.mxu0 %v217
    %1923 = vmatmul.bf16.gmra.mxu0 %v1913
    %v1924 = vpop.f32.mrf.mxu0
    %v1925 = vadd.f32 0.0, %v1924
    %v1926 = vpop.f32.mrf.mxu0
    %v1927 = vadd.f32 0.0, %v1926
    %1928 = vmatmul.bf16.gmra.mxu0 %v1914
    %v1929 = vpop.f32.mrf.mxu0
    %v1930 = vadd.f32 0.0, %v1929
    %v1931 = vpop.f32.mrf.mxu0
    %v1932 = vadd.f32 0.0, %v1931
    %1933 = vdwg.mxu0
    %1934 = vmatpush.bf16.xpose.msra.mxu0 %v232
    %1935 = vmatpush.bf16.xpose.msra.mxu0 %v231
    %1936 = vmatpush.bf16.xpose.msra.mxu0 %v230
    %1937 = vmatpush.bf16.xpose.msra.mxu0 %v229
    %1938 = vmatpush.bf16.xpose.msra.mxu0 %v228
    %1939 = vmatpush.bf16.xpose.msra.mxu0 %v227
    %1940 = vmatpush.bf16.xpose.msra.mxu0 %v226
    %1941 = vmatpush.bf16.xpose.msra.mxu0 %v225
    %1942 = vmatmul.bf16.gmra.mxu0 %v1913
    %v1943 = vpop.f32.mrf.mxu0
    %v1944 = vadd.f32 0.0, %v1943
    %v1945 = vpop.f32.mrf.mxu0
    %v1946 = vadd.f32 0.0, %v1945
    %1947 = vmatmul.bf16.gmra.mxu0 %v1914
    %v1948 = vpop.f32.mrf.mxu0
    %v1949 = vadd.f32 0.0, %v1948
    %v1950 = vpop.f32.mrf.mxu0
    %v1951 = vadd.f32 0.0, %v1950
    %1952 = vdwg.mxu0
    %1953 = vst [vmem:[#allocation2] sm:$0xff] %v1925
    %1954 = vst [vmem:[#allocation2 + $0x8] sm:$0xff] %v1944
    %1955 = vst [vmem:[#allocation2 + $0x10] sm:$0xff] %v1927
    %1956 = vst [vmem:[#allocation2 + $0x18] sm:$0xff] %v1946
    %1957 = vst [vmem:[#allocation2 + $0x20] sm:$0xff] %v1930
    %1958 = vst [vmem:[#allocation2 + $0x28] sm:$0xff] %v1949
    %1959 = vst [vmem:[#allocation2 + $0x30] sm:$0xff] %v1932
    %1960 = vst [vmem:[#allocation2 + $0x38] sm:$0xff] %v1951
    // Predicated region
    $region62: #{vae_router_forward.1} parent=1 // pred_check
      _
    $region63: #{vae_router_forward.1} parent=1 // pred_check_branch
      %1962 = sbr.rel (0) target = $region65
    $region64: #{vae_router_forward.1} parent=1 // pred_region
      %1964 = vsyncadd [#allocation3], 0
      %s1965 = sshll.u32 [#allocation2], 4
      %s1966 = int_to_ptr.vmem [resolvable:$true] %s1965
      %s1967 = sshll.u32 %s15, 4
      %s1968 = int_to_ptr.hbm [resolvable:$true] %s1967
      %1973 = dma.vmem_to_hbm [thread:$0]  %s1966, 1024, %s1968, [#allocation3], 256, 256, 16
    $region65: #{vae_router_forward.1} parent=1 // pred_fallthru
      _
    // Predicated region
    $region66: #{vae_router_forward.1} parent=1 // pred_check
      _
    $region67: #{vae_router_forward.1} parent=1 // pred_check_branch
      %1975 = sbr.rel (0) target = $region69
    $region68: #{vae_router_forward.1} parent=1 // pred_region
      %1977 = dma.done [#allocation3], 1024
    $region69: #{vae_router_forward.1} parent=1 // pred_fallthru
      _
    %1978 = vsyncpa [#allocation3], 1

</llo_original>
